<compile_context>
chip_gen: v5e
topology: v5e:2x2
jax: 0.10.0
libtpu: 0.0.40
codegen_flags: <defaults>
</compile_context>

<pallas_src>
import functools

import jax
import jax.numpy as jnp
from jax import lax
from jax.experimental import pallas as pl
from jax.experimental.pallas import tpu as pltpu


def _mlp_kernel(x_ref, w1_ref, b1_ref, wdw_ref, bdw_ref, w2_ref, b2_ref,
                m_ref, o_ref, *, W, HW):
    """One grid step: Nb images folded onto the lane axis (length L = Nb*HW).

    x_ref: (Nb, Cin, HW)   o_ref: (Nb, Cout, HW)   m_ref: (9, Nb*HW) border masks
    """
    Nb = x_ref.shape[0]
    L = Nb * HW
    mxu_dtype = w1_ref.dtype

    # Fold the Nb images of this step onto the lane axis (tiny, lane-aligned
    # concat on the Cin-row input) so the matmuls and VPU work see one fat,
    # lane-dense (C, L) tile.
    if Nb == 1:
        x2 = x_ref[0]                                          # (Cin, HW)
    else:
        x2 = jnp.concatenate([x_ref[n] for n in range(Nb)], axis=1)

    # ---- fc1: 1x1 conv on the MXU (bf16 operands, f32 accumulate) ----------
    # BN scale is pre-folded into w1; only the folded bias add remains.
    h = jnp.dot(w1_ref[...], x2.astype(mxu_dtype),
                preferred_element_type=jnp.float32)
    h = h + b1_ref[...]                                        # (Chid, L) f32

    # ---- depthwise 3x3 conv, stride 1, pad 1, with bias ---------------------
    # Nine taps via static XLU lane rotates (pltpu.roll).  The precomputed
    # border masks zero every tap whose source pixel falls outside its own
    # image, which also covers roll wrap-around between the folded images and
    # at the ends of the lane axis.  All tap math stays on the VPU in f32.
    wdw = wdw_ref[...]                                         # (Chid, 9)
    masks = m_ref[...]                                         # (9, L) of {0,1}
    acc = h * wdw[:, 4:5]                                      # centre tap (always valid)
    for dy in (-1, 0, 1):
        for dx in (-1, 0, 1):
            if dy == 0 and dx == 0:
                continue
            off = dy * W + dx                                  # flattened offset
            t = (dy + 1) * 3 + (dx + 1)
            tap = pltpu.roll(h, shift=(-off) % L, axis=1)      # tap[p] = h[p + off]
            acc = acc + (tap * masks[t:t + 1, :]) * wdw[:, t:t + 1]
    acc = acc + bdw_ref[...]                                   # depthwise bias
    acc = jnp.maximum(acc, 0.0)                                # ReLU (dropout p=0)

    # ---- fc2: 1x1 conv on the MXU (BN scale folded into w2) + bias ----------
    y = jnp.dot(w2_ref[...], acc.astype(mxu_dtype),
                preferred_element_type=jnp.float32)
    y = (y + b2_ref[...]).astype(o_ref.dtype)                  # (Cout, L)

    for n in range(Nb):                                        # lane-dense stores
        o_ref[n, :, :] = y[:, n * HW:(n + 1) * HW]


def _fold_bn(gamma, beta, mean, var, eps):
    scale = gamma / jnp.sqrt(var + eps)
    return scale, beta - mean * scale


def mlp_forward(x_nchw, fc1_w, bn1, dw_w, dw_b, fc2_w, bn2, *, eps=1e-5,
                mxu_dtype=jnp.bfloat16, images_per_step=None,
                vmem_limit_bytes=64 * 1024 * 1024):
    """SeaFormer Mlp forward (inference): (N, Cin, H, W) -> (N, Cout, H, W).

    fc1_w: (Chid, Cin, 1, 1)   bn1/bn2: (gamma, beta, running_mean, running_var)
    dw_w : (Chid, 1, 3, 3)     dw_b: (Chid,)     fc2_w: (Cout, Chid, 1, 1)
    """
    N, Cin, H, W = x_nchw.shape
    Chid = fc1_w.shape[0]
    Cout = fc2_w.shape[0]
    HW = H * W

    # ---- one-time host-side prep: fold BN scales into the 1x1 weights ------
    s1, b1 = _fold_bn(*bn1, eps)
    s2, b2 = _fold_bn(*bn2, eps)
    w1 = (fc1_w.reshape(Chid, Cin) * s1[:, None]).astype(mxu_dtype)   # (Chid, Cin)
    w2 = (fc2_w.reshape(Cout, Chid) * s2[:, None]).astype(mxu_dtype)  # (Cout, Chid)
    b1 = b1[:, None].astype(jnp.float32)                              # (Chid, 1)
    b2 = b2[:, None].astype(jnp.float32)                              # (Cout, 1)
    wdw = dw_w.reshape(Chid, 9).astype(jnp.float32)                   # (Chid, 3*ky+kx)
    bdw = dw_b[:, None].astype(jnp.float32)                           # (Chid, 1)

    # Images per grid step: amortise the ~0.35us/step overhead with fatter
    # steps while keeping the per-step f32 working set well inside the v7x
    # scoped-VMEM budget (inputs/outputs are double-buffered by Pallas).
    if images_per_step is None:
        budget_bytes = 16 * 1024 * 1024
        per_image = (2 * Cin + 4 * Chid + 2 * Cout) * HW * 4
        images_per_step = max(1, min(N, budget_bytes // max(per_image, 1)))
        while N % images_per_step:
            images_per_step -= 1
    Nb = images_per_step
    assert N % Nb == 0, "images_per_step must divide the batch size"
    G = N // Nb
    L = Nb * HW

    # Host-precomputed 3x3 border masks (depend only on H, W), tiled over the
    # Nb images folded onto the lane axis.  DMA'd once as a constant input.
    rows = jnp.arange(HW, dtype=jnp.int32) // W
    cols = jnp.arange(HW, dtype=jnp.int32) % W
    m = []
    for dy in (-1, 0, 1):
        for dx in (-1, 0, 1):
            m.append((rows + dy >= 0) & (rows + dy < H)
                     & (cols + dx >= 0) & (cols + dx < W))
    masks = jnp.tile(jnp.stack(m).astype(jnp.float32), (1, Nb))       # (9, L)

    # Channels-major, spatially-flattened layout: lane axis = H*W (dense),
    # reached with a pure reshape (no transpose) from NCHW.
    x = x_nchw.reshape(N, Cin, HW)

    kernel = functools.partial(_mlp_kernel, W=W, HW=HW)
    grid_spec = pltpu.PrefetchScalarGridSpec(
        num_scalar_prefetch=0,
        grid=(G,),                                    # Nb images per step
        in_specs=[
            pl.BlockSpec((Nb, Cin, HW), lambda g: (g, 0, 0)),
            # Constant streams below are fetched once per kernel launch.
            pl.BlockSpec((Chid, Cin), lambda g: (0, 0)),
            pl.BlockSpec((Chid, 1), lambda g: (0, 0)),
            pl.BlockSpec((Chid, 9), lambda g: (0, 0)),
            pl.BlockSpec((Chid, 1), lambda g: (0, 0)),
            pl.BlockSpec((Cout, Chid), lambda g: (0, 0)),
            pl.BlockSpec((Cout, 1), lambda g: (0, 0)),
            pl.BlockSpec((9, L), lambda g: (0, 0)),
        ],
        out_specs=pl.BlockSpec((Nb, Cout, HW), lambda g: (g, 0, 0)),
    )
    out = pl.pallas_call(
        kernel,
        out_shape=jax.ShapeDtypeStruct((N, Cout, HW), x_nchw.dtype),
        grid_spec=grid_spec,
        compiler_params=pltpu.CompilerParams(
            dimension_semantics=("parallel",),   # shard batch groups over TCs (v7x)
            vmem_limit_bytes=vmem_limit_bytes,
        ),
    )(x, w1, b1, wdw, bdw, w2, b2, masks)
    return out.reshape(N, Cout, H, W)


def ref_forward(x, fc1_w, bn1, dw_w, dw_b, fc2_w, bn2, eps=1e-5):
    """Pure-JAX NCHW reference mirroring the PyTorch module in eval mode."""
    def bn(h, g, b, m, v):
        s = g / jnp.sqrt(v + eps)
        return h * s[None, :, None, None] + (b - m * s)[None, :, None, None]

    h = lax.conv_general_dilated(
        x, fc1_w, (1, 1), 'VALID',
        dimension_numbers=('NCHW', 'OIHW', 'NCHW'))
    h = bn(h, *bn1)
    h = lax.conv_general_dilated(
        h, dw_w, (1, 1), ((1, 1), (1, 1)),
        dimension_numbers=('NCHW', 'OIHW', 'NCHW'),
        feature_group_count=dw_w.shape[0]) + dw_b[None, :, None, None]
    h = jnp.maximum(h, 0.0)
    y = lax.conv_general_dilated(
        h, fc2_w, (1, 1), 'VALID',
        dimension_numbers=('NCHW', 'OIHW', 'NCHW'))
    return bn(y, *bn2)


if __name__ == "__main__":
    key = jax.random.PRNGKey(0)
    N, Cin, H, W = 2, 4, 16, 16
    Chid, Cout = 32, 4                     # hidden_features, out_features

    ks = jax.random.split(key, 10)
    x = jax.random.normal(ks[0], (N, Cin, H, W), jnp.float32)

    # fc1: Conv2d(Cin, Chid, 1, bias=False) + BN (weight init 1, bias 0)
    fc1_w = jax.random.normal(ks[1], (Chid, Cin, 1, 1), jnp.float32) * 0.2
    bn1 = (jnp.ones((Chid,), jnp.float32),
           jnp.zeros((Chid,), jnp.float32),
           jax.random.normal(ks[2], (Chid,), jnp.float32) * 0.05,
           jax.nn.softplus(jax.random.normal(ks[3], (Chid,), jnp.float32)) + 0.5)

    # dwconv: Conv2d(Chid, Chid, 3, 1, 1, groups=Chid, bias=True)
    dw_w = jax.random.normal(ks[4], (Chid, 1, 3, 3), jnp.float32) * 0.2
    dw_b = jax.random.normal(ks[5], (Chid,), jnp.float32) * 0.1

    # fc2: Conv2d(Chid, Cout, 1, bias=False) + BN
    fc2_w = jax.random.normal(ks[6], (Cout, Chid, 1, 1), jnp.float32) * 0.2
    bn2 = (jnp.ones((Cout,), jnp.float32),
           jnp.zeros((Cout,), jnp.float32),
           jax.random.normal(ks[7], (Cout,), jnp.float32) * 0.05,
           jax.nn.softplus(jax.random.normal(ks[8], (Cout,), jnp.float32)) + 0.5)

    ref = ref_forward(x, fc1_w, bn1, dw_w, dw_b, fc2_w, bn2)

    # 1) f32 MXU operands: validates the kernel structure (BN folding, roll-
    #    based taps, border masks, image folding) against the reference to
    #    tight tolerance.
    out_f32 = jax.block_until_ready(
        mlp_forward(x, fc1_w, bn1, dw_w, dw_b, fc2_w, bn2,
                    mxu_dtype=jnp.float32))
    assert out_f32.shape == (N, Cout, H, W)
    err_f32 = jnp.max(jnp.abs(out_f32 - ref))
    assert jnp.allclose(out_f32, ref, atol=1e-4, rtol=1e-4), \
        f"f32 path max abs err {err_f32}"

    # Explicit border-pixel regression check for the roll + mask tap scheme.
    border = jnp.zeros((H, W), bool)
    border = border.at[0, :].set(True).at[-1, :].set(True)
    border = border.at[:, 0].set(True).at[:, -1].set(True)
    err_border = jnp.max(jnp.abs((out_f32 - ref) * border[None, None]))
    assert err_border < 1e-4, f"border max abs err {err_border}"

    # 2) Same f32 path with one image per grid step (exercises the Nb=1 /
    #    multi-step-grid branch).
    out_f32_nb1 = jax.block_until_ready(
        mlp_forward(x, fc1_w, bn1, dw_w, dw_b, fc2_w, bn2,
                    mxu_dtype=jnp.float32, images_per_step=1))
    assert jnp.allclose(out_f32_nb1, ref, atol=1e-4, rtol=1e-4)

    # 3) Default production path: bf16 MXU operands, f32 accumulation and
    #    f32 VPU math (looser tolerance due to bf16 operand rounding).
    out_bf16 = jax.block_until_ready(
        mlp_forward(x, fc1_w, bn1, dw_w, dw_b, fc2_w, bn2))
    err_bf16 = jnp.max(jnp.abs(out_bf16 - ref))
    assert err_bf16 < 1e-1, f"bf16 path max abs err {err_bf16}"

    print("KERNEL_OK")
</pallas_src>

<mosaic_0001>
module attributes {stable_mosaic.version = 11 : i64} {
  func.func @_mlp_kernel(%arg0: i32, %arg1: memref<2x4x256xf32, #tpu.memory_space<vmem>>, %arg2: memref<32x4xf32, #tpu.memory_space<vmem>>, %arg3: memref<32x1xf32, #tpu.memory_space<vmem>>, %arg4: memref<32x9xf32, #tpu.memory_space<vmem>>, %arg5: memref<32x1xf32, #tpu.memory_space<vmem>>, %arg6: memref<4x32xf32, #tpu.memory_space<vmem>>, %arg7: memref<4x1xf32, #tpu.memory_space<vmem>>, %arg8: memref<9x512xf32, #tpu.memory_space<vmem>>, %arg9: memref<2x4x256xf32, #tpu.memory_space<vmem>>) attributes {dimension_semantics = [#tpu.dimension_semantics<parallel>], iteration_bounds = array<i64: 1>, scalar_prefetch = 0 : i64, scratch_operands = 0 : i64, tpu.core_type = #tpu.core_type<tc>, window_params = [{transform_indices = @transform_0, window_bounds = array<i64: 2, 4, 256>}, {pipeline_mode = #tpu.pipeline_mode<synchronous>, transform_indices = @transform_1, window_bounds = array<i64: 32, 4>}, {pipeline_mode = #tpu.pipeline_mode<synchronous>, transform_indices = @transform_2, window_bounds = array<i64: 32, 1>}, {pipeline_mode = #tpu.pipeline_mode<synchronous>, transform_indices = @transform_3, window_bounds = array<i64: 32, 9>}, {pipeline_mode = #tpu.pipeline_mode<synchronous>, transform_indices = @transform_4, window_bounds = array<i64: 32, 1>}, {pipeline_mode = #tpu.pipeline_mode<synchronous>, transform_indices = @transform_5, window_bounds = array<i64: 4, 32>}, {pipeline_mode = #tpu.pipeline_mode<synchronous>, transform_indices = @transform_6, window_bounds = array<i64: 4, 1>}, {pipeline_mode = #tpu.pipeline_mode<synchronous>, transform_indices = @transform_7, window_bounds = array<i64: 9, 512>}, {transform_indices = @transform_8, window_bounds = array<i64: 2, 4, 256>}]} {
    %c0 = arith.constant 0 : index
    %c0_0 = arith.constant 0 : index
    %c0_1 = arith.constant 0 : index
    %0 = vector.load %arg1[%c0, %c0_0, %c0_1] : memref<2x4x256xf32, #tpu.memory_space<vmem>>, vector<1x4x256xf32>
    %1 = vector.shape_cast %0 : vector<1x4x256xf32> to vector<4x256xf32>
    %c1 = arith.constant 1 : index
    %c0_2 = arith.constant 0 : index
    %c0_3 = arith.constant 0 : index
    %2 = vector.load %arg1[%c1, %c0_2, %c0_3] : memref<2x4x256xf32, #tpu.memory_space<vmem>>, vector<1x4x256xf32>
    %3 = vector.shape_cast %2 : vector<1x4x256xf32> to vector<4x256xf32>
    %4 = tpu.concatenate %1, %3 in 1 : vector<4x256xf32>, vector<4x256xf32> -> vector<4x512xf32>
    %c0_4 = arith.constant 0 : index
    %c0_5 = arith.constant 0 : index
    %5 = vector.load %arg2[%c0_4, %c0_5] : memref<32x4xf32, #tpu.memory_space<vmem>>, vector<32x4xf32>
    %cst = arith.constant dense<0.000000e+00> : vector<32x512xf32>
    %6 = tpu.matmul %5, %4, %cst {dimension_numbers = #tpu.dot_dimension_numbers<[1], [0], [0], [1], [0, 0, 1, 1], [], []>} : vector<32x4xf32>, vector<4x512xf32>, vector<32x512xf32> -> vector<32x512xf32>
    %c0_6 = arith.constant 0 : index
    %c0_7 = arith.constant 0 : index
    %7 = vector.load %arg3[%c0_6, %c0_7] : memref<32x1xf32, #tpu.memory_space<vmem>>, vector<32x1xf32>
    %8 = vector.broadcast %7 : vector<32x1xf32> to vector<32x512xf32>
    %9 = arith.addf %6, %8 : vector<32x512xf32>
    %c0_8 = arith.constant 0 : index
    %c0_9 = arith.constant 0 : index
    %10 = vector.load %arg4[%c0_8, %c0_9] : memref<32x9xf32, #tpu.memory_space<vmem>>, vector<32x9xf32>
    %c0_10 = arith.constant 0 : index
    %c0_11 = arith.constant 0 : index
    %11 = vector.load %arg8[%c0_10, %c0_11] : memref<9x512xf32, #tpu.memory_space<vmem>>, vector<9x512xf32>
    %12 = vector.extract_strided_slice %10 {offsets = [0, 4], sizes = [32, 1], strides = [1, 1]} : vector<32x9xf32> to vector<32x1xf32>
    %13 = vector.broadcast %12 : vector<32x1xf32> to vector<32x512xf32>
    %14 = arith.mulf %9, %13 : vector<32x512xf32>
    %c17_i32 = arith.constant 17 : i32
    %15 = tpu.dynamic_rotate %9 by %c17_i32 dim 1 : vector<32x512xf32>, i32 -> vector<32x512xf32>
    %16 = vector.extract_strided_slice %11 {offsets = [0, 0], sizes = [1, 512], strides = [1, 1]} : vector<9x512xf32> to vector<1x512xf32>
    %17 = vector.broadcast %16 : vector<1x512xf32> to vector<32x512xf32>
    %18 = arith.mulf %15, %17 : vector<32x512xf32>
    %19 = vector.extract_strided_slice %10 {offsets = [0, 0], sizes = [32, 1], strides = [1, 1]} : vector<32x9xf32> to vector<32x1xf32>
    %20 = vector.broadcast %19 : vector<32x1xf32> to vector<32x512xf32>
    %21 = arith.mulf %18, %20 : vector<32x512xf32>
    %22 = arith.addf %14, %21 : vector<32x512xf32>
    %c16_i32 = arith.constant 16 : i32
    %23 = tpu.dynamic_rotate %9 by %c16_i32 dim 1 : vector<32x512xf32>, i32 -> vector<32x512xf32>
    %24 = vector.extract_strided_slice %11 {offsets = [1, 0], sizes = [1, 512], strides = [1, 1]} : vector<9x512xf32> to vector<1x512xf32>
    %25 = vector.broadcast %24 : vector<1x512xf32> to vector<32x512xf32>
    %26 = arith.mulf %23, %25 : vector<32x512xf32>
    %27 = vector.extract_strided_slice %10 {offsets = [0, 1], sizes = [32, 1], strides = [1, 1]} : vector<32x9xf32> to vector<32x1xf32>
    %28 = vector.broadcast %27 : vector<32x1xf32> to vector<32x512xf32>
    %29 = arith.mulf %26, %28 : vector<32x512xf32>
    %30 = arith.addf %22, %29 : vector<32x512xf32>
    %c15_i32 = arith.constant 15 : i32
    %31 = tpu.dynamic_rotate %9 by %c15_i32 dim 1 : vector<32x512xf32>, i32 -> vector<32x512xf32>
    %32 = vector.extract_strided_slice %11 {offsets = [2, 0], sizes = [1, 512], strides = [1, 1]} : vector<9x512xf32> to vector<1x512xf32>
    %33 = vector.broadcast %32 : vector<1x512xf32> to vector<32x512xf32>
    %34 = arith.mulf %31, %33 : vector<32x512xf32>
    %35 = vector.extract_strided_slice %10 {offsets = [0, 2], sizes = [32, 1], strides = [1, 1]} : vector<32x9xf32> to vector<32x1xf32>
    %36 = vector.broadcast %35 : vector<32x1xf32> to vector<32x512xf32>
    %37 = arith.mulf %34, %36 : vector<32x512xf32>
    %38 = arith.addf %30, %37 : vector<32x512xf32>
    %c1_i32 = arith.constant 1 : i32
    %39 = tpu.dynamic_rotate %9 by %c1_i32 dim 1 : vector<32x512xf32>, i32 -> vector<32x512xf32>
    %40 = vector.extract_strided_slice %11 {offsets = [3, 0], sizes = [1, 512], strides = [1, 1]} : vector<9x512xf32> to vector<1x512xf32>
    %41 = vector.broadcast %40 : vector<1x512xf32> to vector<32x512xf32>
    %42 = arith.mulf %39, %41 : vector<32x512xf32>
    %43 = vector.extract_strided_slice %10 {offsets = [0, 3], sizes = [32, 1], strides = [1, 1]} : vector<32x9xf32> to vector<32x1xf32>
    %44 = vector.broadcast %43 : vector<32x1xf32> to vector<32x512xf32>
    %45 = arith.mulf %42, %44 : vector<32x512xf32>
    %46 = arith.addf %38, %45 : vector<32x512xf32>
    %c511_i32 = arith.constant 511 : i32
    %47 = tpu.dynamic_rotate %9 by %c511_i32 dim 1 : vector<32x512xf32>, i32 -> vector<32x512xf32>
    %48 = vector.extract_strided_slice %11 {offsets = [5, 0], sizes = [1, 512], strides = [1, 1]} : vector<9x512xf32> to vector<1x512xf32>
    %49 = vector.broadcast %48 : vector<1x512xf32> to vector<32x512xf32>
    %50 = arith.mulf %47, %49 : vector<32x512xf32>
    %51 = vector.extract_strided_slice %10 {offsets = [0, 5], sizes = [32, 1], strides = [1, 1]} : vector<32x9xf32> to vector<32x1xf32>
    %52 = vector.broadcast %51 : vector<32x1xf32> to vector<32x512xf32>
    %53 = arith.mulf %50, %52 : vector<32x512xf32>
    %54 = arith.addf %46, %53 : vector<32x512xf32>
    %c497_i32 = arith.constant 497 : i32
    %55 = tpu.dynamic_rotate %9 by %c497_i32 dim 1 : vector<32x512xf32>, i32 -> vector<32x512xf32>
    %56 = vector.extract_strided_slice %11 {offsets = [6, 0], sizes = [1, 512], strides = [1, 1]} : vector<9x512xf32> to vector<1x512xf32>
    %57 = vector.broadcast %56 : vector<1x512xf32> to vector<32x512xf32>
    %58 = arith.mulf %55, %57 : vector<32x512xf32>
    %59 = vector.extract_strided_slice %10 {offsets = [0, 6], sizes = [32, 1], strides = [1, 1]} : vector<32x9xf32> to vector<32x1xf32>
    %60 = vector.broadcast %59 : vector<32x1xf32> to vector<32x512xf32>
    %61 = arith.mulf %58, %60 : vector<32x512xf32>
    %62 = arith.addf %54, %61 : vector<32x512xf32>
    %c496_i32 = arith.constant 496 : i32
    %63 = tpu.dynamic_rotate %9 by %c496_i32 dim 1 : vector<32x512xf32>, i32 -> vector<32x512xf32>
    %64 = vector.extract_strided_slice %11 {offsets = [7, 0], sizes = [1, 512], strides = [1, 1]} : vector<9x512xf32> to vector<1x512xf32>
    %65 = vector.broadcast %64 : vector<1x512xf32> to vector<32x512xf32>
    %66 = arith.mulf %63, %65 : vector<32x512xf32>
    %67 = vector.extract_strided_slice %10 {offsets = [0, 7], sizes = [32, 1], strides = [1, 1]} : vector<32x9xf32> to vector<32x1xf32>
    %68 = vector.broadcast %67 : vector<32x1xf32> to vector<32x512xf32>
    %69 = arith.mulf %66, %68 : vector<32x512xf32>
    %70 = arith.addf %62, %69 : vector<32x512xf32>
    %c495_i32 = arith.constant 495 : i32
    %71 = tpu.dynamic_rotate %9 by %c495_i32 dim 1 : vector<32x512xf32>, i32 -> vector<32x512xf32>
    %72 = vector.extract_strided_slice %11 {offsets = [8, 0], sizes = [1, 512], strides = [1, 1]} : vector<9x512xf32> to vector<1x512xf32>
    %73 = vector.broadcast %72 : vector<1x512xf32> to vector<32x512xf32>
    %74 = arith.mulf %71, %73 : vector<32x512xf32>
    %75 = vector.extract_strided_slice %10 {offsets = [0, 8], sizes = [32, 1], strides = [1, 1]} : vector<32x9xf32> to vector<32x1xf32>
    %76 = vector.broadcast %75 : vector<32x1xf32> to vector<32x512xf32>
    %77 = arith.mulf %74, %76 : vector<32x512xf32>
    %78 = arith.addf %70, %77 : vector<32x512xf32>
    %c0_12 = arith.constant 0 : index
    %c0_13 = arith.constant 0 : index
    %79 = vector.load %arg5[%c0_12, %c0_13] : memref<32x1xf32, #tpu.memory_space<vmem>>, vector<32x1xf32>
    %80 = vector.broadcast %79 : vector<32x1xf32> to vector<32x512xf32>
    %81 = arith.addf %78, %80 : vector<32x512xf32>
    %cst_14 = arith.constant 0.000000e+00 : f32
    %82 = vector.broadcast %cst_14 : f32 to vector<32x512xf32>
    %83 = arith.maximumf %81, %82 : vector<32x512xf32>
    %c0_15 = arith.constant 0 : index
    %c0_16 = arith.constant 0 : index
    %84 = vector.load %arg6[%c0_15, %c0_16] : memref<4x32xf32, #tpu.memory_space<vmem>>, vector<4x32xf32>
    %cst_17 = arith.constant dense<0.000000e+00> : vector<4x512xf32>
    %85 = tpu.matmul %84, %83, %cst_17 {dimension_numbers = #tpu.dot_dimension_numbers<[1], [0], [0], [1], [0, 0, 1, 1], [], []>} : vector<4x32xf32>, vector<32x512xf32>, vector<4x512xf32> -> vector<4x512xf32>
    %c0_18 = arith.constant 0 : index
    %c0_19 = arith.constant 0 : index
    %86 = vector.load %arg7[%c0_18, %c0_19] : memref<4x1xf32, #tpu.memory_space<vmem>>, vector<4x1xf32>
    %87 = vector.broadcast %86 : vector<4x1xf32> to vector<4x512xf32>
    %88 = arith.addf %85, %87 : vector<4x512xf32>
    %89 = vector.extract_strided_slice %88 {offsets = [0, 0], sizes = [4, 256], strides = [1, 1]} : vector<4x512xf32> to vector<4x256xf32>
    %c0_20 = arith.constant 0 : index
    %c0_21 = arith.constant 0 : index
    %c0_22 = arith.constant 0 : index
    %90 = vector.load %arg9[%c0_20, %c0_21, %c0_22] : memref<2x4x256xf32, #tpu.memory_space<vmem>>, vector<1x4x256xf32>
    %91 = vector.shape_cast %90 : vector<1x4x256xf32> to vector<4x256xf32>
    %92 = vector.shape_cast %89 : vector<4x256xf32> to vector<1x4x256xf32>
    tpu.vector_store %arg9[%c0_20, %c0_21, %c0_22], %92 {strides = array<i32>} : memref<2x4x256xf32, #tpu.memory_space<vmem>>, vector<1x4x256xf32>,
    %93 = vector.extract_strided_slice %88 {offsets = [0, 256], sizes = [4, 256], strides = [1, 1]} : vector<4x512xf32> to vector<4x256xf32>
    %c1_23 = arith.constant 1 : index
    %c0_24 = arith.constant 0 : index
    %c0_25 = arith.constant 0 : index
    %94 = vector.load %arg9[%c1_23, %c0_24, %c0_25] : memref<2x4x256xf32, #tpu.memory_space<vmem>>, vector<1x4x256xf32>
    %95 = vector.shape_cast %94 : vector<1x4x256xf32> to vector<4x256xf32>
    %96 = vector.shape_cast %93 : vector<4x256xf32> to vector<1x4x256xf32>
    tpu.vector_store %arg9[%c1_23, %c0_24, %c0_25], %96 {strides = array<i32>} : memref<2x4x256xf32, #tpu.memory_space<vmem>>, vector<1x4x256xf32>,
    return
  }
  func.func @transform_0(%arg0: i32) -> (i32, i32, i32) {
    %c0_i32 = arith.constant 0 : i32
    %c0_i32_0 = arith.constant 0 : i32
    %c0_i32_1 = arith.constant 0 : i32
    return %arg0, %c0_i32, %c0_i32_0 : i32, i32, i32
  }
  func.func @transform_1(%arg0: i32) -> (i32, i32) {
    %c0_i32 = arith.constant 0 : i32
    %c0_i32_0 = arith.constant 0 : i32
    %c0_i32_1 = arith.constant 0 : i32
    return %c0_i32, %c0_i32_0 : i32, i32
  }
  func.func @transform_2(%arg0: i32) -> (i32, i32) {
    %c0_i32 = arith.constant 0 : i32
    %c0_i32_0 = arith.constant 0 : i32
    %c0_i32_1 = arith.constant 0 : i32
    return %c0_i32, %c0_i32_0 : i32, i32
  }
  func.func @transform_3(%arg0: i32) -> (i32, i32) {
    %c0_i32 = arith.constant 0 : i32
    %c0_i32_0 = arith.constant 0 : i32
    %c0_i32_1 = arith.constant 0 : i32
    return %c0_i32, %c0_i32_0 : i32, i32
  }
  func.func @transform_4(%arg0: i32) -> (i32, i32) {
    %c0_i32 = arith.constant 0 : i32
    %c0_i32_0 = arith.constant 0 : i32
    %c0_i32_1 = arith.constant 0 : i32
    return %c0_i32, %c0_i32_0 : i32, i32
  }
  func.func @transform_5(%arg0: i32) -> (i32, i32) {
    %c0_i32 = arith.constant 0 : i32
    %c0_i32_0 = arith.constant 0 : i32
    %c0_i32_1 = arith.constant 0 : i32
    return %c0_i32, %c0_i32_0 : i32, i32
  }
  func.func @transform_6(%arg0: i32) -> (i32, i32) {
    %c0_i32 = arith.constant 0 : i32
    %c0_i32_0 = arith.constant 0 : i32
    %c0_i32_1 = arith.constant 0 : i32
    return %c0_i32, %c0_i32_0 : i32, i32
  }
  func.func @transform_7(%arg0: i32) -> (i32, i32) {
    %c0_i32 = arith.constant 0 : i32
    %c0_i32_0 = arith.constant 0 : i32
    %c0_i32_1 = arith.constant 0 : i32
    return %c0_i32, %c0_i32_0 : i32, i32
  }
  func.func @transform_8(%arg0: i32) -> (i32, i32, i32) {
    %c0_i32 = arith.constant 0 : i32
    %c0_i32_0 = arith.constant 0 : i32
    %c0_i32_1 = arith.constant 0 : i32
    return %arg0, %c0_i32, %c0_i32_0 : i32, i32, i32
  }
}

</mosaic_0001>

<llo_original>
// kernel: tpu_custom_call.1
$region0: #{tpu_custom_call.1}
  #allocation0 [shape = 'u32[]', space=smem, size = 0x4, offset = 0x4, fixed_abs, tag = 'smem constant byte address 0x4 - core index']
  #allocation1 [shape = 'u32[72,128]{1,0:T(1,128)}', space=vmem, size = 0x9000, scoped, tag = 'internal scratch']
  %s0 = inlined_call_operand.vmem [shape: f32[2,4,256], index: 0, kind: input, shape index: {}]
  %s1 = inlined_call_operand.vmem [shape: f32[32,4], index: 1, kind: input, shape index: {}]
  %s2 = inlined_call_operand.vmem [shape: f32[32,1], index: 2, kind: input, shape index: {}]
  %s3 = inlined_call_operand.vmem [shape: f32[32,9], index: 3, kind: input, shape index: {}]
  %s4 = inlined_call_operand.vmem [shape: f32[32,1], index: 4, kind: input, shape index: {}]
  %s5 = inlined_call_operand.vmem [shape: f32[4,32], index: 5, kind: input, shape index: {}]
  %s6 = inlined_call_operand.vmem [shape: f32[4,1], index: 6, kind: input, shape index: {}]
  %s7 = inlined_call_operand.vmem [shape: f32[9,512], index: 7, kind: input, shape index: {}]
  %s8 = inlined_call_operand.hbm [shape: f32[2,4,256], index: 8, kind: output, shape index: {}]
  %s9 = sld [smem:[#allocation0]]
  $region42: #{tpu_custom_call.1} parent=0
    _
  %s11 = ssub.s32 1, %s9
  %s12 = scalar_select 0, %s11, %s9
  $region1: #{tpu_custom_call.1} parent=0
    #allocation2 [shape = 'u8[8192]{0}', space=vmem, size = 0x2000, scoped, tag = 'output window, operand 0, single buffered']
    #allocation3 [shape = 's32[1]{0}', space=sflag, size = 0x4, scoped, tag = 'scoped memory for tpu_custom_call.1']
    %13 = vsyncpa [#allocation3], 0
    // Predicated region
    $region2: #{tpu_custom_call.1} parent=1 // pred_check
      _
    $region3: #{tpu_custom_call.1} parent=1 // pred_check_branch
      %15 = sbr.rel (0) target = $region5
    $region4: #{tpu_custom_call.1} parent=1 // pred_region
      _
    $region5: #{tpu_custom_call.1} parent=1 // pred_fallthru
      _
    // Predicated region
    $region6: #{tpu_custom_call.1} parent=1 // pred_check
      _
    $region7: #{tpu_custom_call.1} parent=1 // pred_check_branch
      %17 = sbr.rel (0) target = $region9
    $region8: #{tpu_custom_call.1} parent=1 // pred_region
      _
    $region9: #{tpu_custom_call.1} parent=1 // pred_fallthru
      _
    // Predicated region
    $region10: #{tpu_custom_call.1} parent=1 // pred_check
      _
    $region11: #{tpu_custom_call.1} parent=1 // pred_check_branch
      %19 = sbr.rel (0) target = $region13
    $region12: #{tpu_custom_call.1} parent=1 // pred_region
      _
    $region13: #{tpu_custom_call.1} parent=1 // pred_fallthru
      _
    // Predicated region
    $region14: #{tpu_custom_call.1} parent=1 // pred_check
      _
    $region15: #{tpu_custom_call.1} parent=1 // pred_check_branch
      %21 = sbr.rel (0) target = $region17
    $region16: #{tpu_custom_call.1} parent=1 // pred_region
      _
    $region17: #{tpu_custom_call.1} parent=1 // pred_fallthru
      _
    // Predicated region
    $region18: #{tpu_custom_call.1} parent=1 // pred_check
      _
    $region19: #{tpu_custom_call.1} parent=1 // pred_check_branch
      %23 = sbr.rel (0) target = $region21
    $region20: #{tpu_custom_call.1} parent=1 // pred_region
      _
    $region21: #{tpu_custom_call.1} parent=1 // pred_fallthru
      _
    // Predicated region
    $region22: #{tpu_custom_call.1} parent=1 // pred_check
      _
    $region23: #{tpu_custom_call.1} parent=1 // pred_check_branch
      %25 = sbr.rel (0) target = $region25
    $region24: #{tpu_custom_call.1} parent=1 // pred_region
      _
    $region25: #{tpu_custom_call.1} parent=1 // pred_fallthru
      _
    // Predicated region
    $region26: #{tpu_custom_call.1} parent=1 // pred_check
      _
    $region27: #{tpu_custom_call.1} parent=1 // pred_check_branch
      %27 = sbr.rel (0) target = $region29
    $region28: #{tpu_custom_call.1} parent=1 // pred_region
      _
    $region29: #{tpu_custom_call.1} parent=1 // pred_fallthru
      _
    // Predicated region
    $region30: #{tpu_custom_call.1} parent=1 // pred_check
      _
    $region31: #{tpu_custom_call.1} parent=1 // pred_check_branch
      %29 = sbr.rel (0) target = $region33
    $region32: #{tpu_custom_call.1} parent=1 // pred_region
      _
    $region33: #{tpu_custom_call.1} parent=1 // pred_fallthru
      _
    %v30 = vld [vmem:[%s0] sm:$0xff]
    %s31 = scalar_lea.vmem %s0, 8
    %v32 = vld [vmem:[%s31] sm:$0xff]
    %34 = vst [vmem:[#allocation1] ss:$2 sm:$0xff] %v30
    %v35 = vld.sshfl [vmem:[#allocation1] sm:$0xff pattern:$0x75316420]
    %v36 = vld.sshfl [vmem:[#allocation1 + $0x8] sm:$0xff pattern:$0x75316420]
    %38 = vst [vmem:[#allocation1] ss:$2 sm:$0xff] %v32
    %v39 = vld.sshfl [vmem:[#allocation1] sm:$0xff pattern:$0x75316420]
    %v40 = vld.sshfl [vmem:[#allocation1 + $0x8] sm:$0xff pattern:$0x75316420]
    %v41 = vld [vmem:[%s1] sm:$0xff]
    %v42 = vld [vmem:[%s1 + $0x8] sm:$0xff]
    %v43 = vld [vmem:[%s1 + $0x10] sm:$0xff]
    %v44 = vld [vmem:[%s1 + $0x18] sm:$0xff]
    %v45 = vld [vmem:[%s2] sm:$0xff]
    %v46 = vld [vmem:[%s2 + $0x8] sm:$0xff]
    %v47 = vld [vmem:[%s2 + $0x10] sm:$0xff]
    %v48 = vld [vmem:[%s2 + $0x18] sm:$0xff]
    %50 = vset.pattern.permute.xlu0 0
    %51 = vperm.xlu0 %50, %v45
    %v52 = vpop.permute.xlu0 %51
    %55 = vset.pattern.permute.xlu0 0
    %56 = vperm.xlu0 %55, %v46
    %v57 = vpop.permute.xlu0 %56
    %60 = vset.pattern.permute.xlu0 0
    %61 = vperm.xlu0 %60, %v47
    %v62 = vpop.permute.xlu0 %61
    %65 = vset.pattern.permute.xlu0 0
    %66 = vperm.xlu0 %65, %v48
    %v67 = vpop.permute.xlu0 %66
    %vm69 = vcmask 31744
    %v71 = vsel %vm69, %v41, 0
    %v74 = vsel %vm69, %v42, 0
    %v77 = vsel %vm69, %v43, 0
    %v80 = vsel %vm69, %v44, 0
    %vm82 = vcmask 1043456
    %v83 = vsel %vm82, %v35, 0
    %v85 = vsel %vm82, %v36, 0
    %v87 = vsel %vm82, %v39, 0
    %v89 = vsel %vm82, %v40, 0
    %91 = vmatpush.msra.mxu0 0.0
    %92 = vmatpush.msra.mxu0 0.0
    %93 = vmatpush.msra.mxu0 0.0
    %94 = vmatpush.msra.mxu0 0.0
    %95 = vmatpush.msra.mxu0 0.0
    %96 = vmatpush.msra.mxu0 0.0
    %97 = vmatpush.msra.mxu0 0.0
    %98 = vmatpush.msra.mxu0 0.0
    %99 = vmatpush.msra.mxu0 0.0
    %100 = vmatpush.msra.mxu0 0.0
    %101 = vmatpush.msra.mxu0 0.0
    %102 = vmatpush.msra.mxu0 0.0
    %103 = vmatpush.msra.mxu0 0.0
    %104 = vmatpush.msra.mxu0 0.0
    %105 = vmatpush.msra.mxu0 0.0
    %106 = vmatpush.msra.mxu0 %v83
    %107 = vmatmul.f32.gmra.mxu0 %v71
    %v108 = vpop.f32.mrf.mxu0
    %v109 = vadd.f32 %v52, %v108
    %110 = vmatmul.f32.gmra.mxu0 %v74
    %v111 = vpop.f32.mrf.mxu0
    %v112 = vadd.f32 %v57, %v111
    %113 = vmatmul.f32.gmra.mxu0 %v77
    %v114 = vpop.f32.mrf.mxu0
    %v115 = vadd.f32 %v62, %v114
    %116 = vmatmul.f32.gmra.mxu0 %v80
    %v117 = vpop.f32.mrf.mxu0
    %v118 = vadd.f32 %v67, %v117
    %119 = vdwg.mxu0
    %120 = vmatpush.msra.mxu0 0.0
    %121 = vmatpush.msra.mxu0 0.0
    %122 = vmatpush.msra.mxu0 0.0
    %123 = vmatpush.msra.mxu0 0.0
    %124 = vmatpush.msra.mxu0 0.0
    %125 = vmatpush.msra.mxu0 0.0
    %126 = vmatpush.msra.mxu0 0.0
    %127 = vmatpush.msra.mxu0 0.0
    %128 = vmatpush.msra.mxu0 0.0
    %129 = vmatpush.msra.mxu0 0.0
    %130 = vmatpush.msra.mxu0 0.0
    %131 = vmatpush.msra.mxu0 0.0
    %132 = vmatpush.msra.mxu0 0.0
    %133 = vmatpush.msra.mxu0 0.0
    %134 = vmatpush.msra.mxu0 0.0
    %135 = vmatpush.msra.mxu0 %v85
    %136 = vmatmul.f32.gmra.mxu0 %v71
    %v137 = vpop.f32.mrf.mxu0
    %v138 = vadd.f32 %v52, %v137
    %139 = vmatmul.f32.gmra.mxu0 %v74
    %v140 = vpop.f32.mrf.mxu0
    %v141 = vadd.f32 %v57, %v140
    %142 = vmatmul.f32.gmra.mxu0 %v77
    %v143 = vpop.f32.mrf.mxu0
    %v144 = vadd.f32 %v62, %v143
    %145 = vmatmul.f32.gmra.mxu0 %v80
    %v146 = vpop.f32.mrf.mxu0
    %v147 = vadd.f32 %v67, %v146
    %148 = vdwg.mxu0
    %149 = vmatpush.msra.mxu0 0.0
    %150 = vmatpush.msra.mxu0 0.0
    %151 = vmatpush.msra.mxu0 0.0
    %152 = vmatpush.msra.mxu0 0.0
    %153 = vmatpush.msra.mxu0 0.0
    %154 = vmatpush.msra.mxu0 0.0
    %155 = vmatpush.msra.mxu0 0.0
    %156 = vmatpush.msra.mxu0 0.0
    %157 = vmatpush.msra.mxu0 0.0
    %158 = vmatpush.msra.mxu0 0.0
    %159 = vmatpush.msra.mxu0 0.0
    %160 = vmatpush.msra.mxu0 0.0
    %161 = vmatpush.msra.mxu0 0.0
    %162 = vmatpush.msra.mxu0 0.0
    %163 = vmatpush.msra.mxu0 0.0
    %164 = vmatpush.msra.mxu0 %v87
    %165 = vmatmul.f32.gmra.mxu0 %v71
    %v166 = vpop.f32.mrf.mxu0
    %v167 = vadd.f32 %v52, %v166
    %168 = vmatmul.f32.gmra.mxu0 %v74
    %v169 = vpop.f32.mrf.mxu0
    %v170 = vadd.f32 %v57, %v169
    %171 = vmatmul.f32.gmra.mxu0 %v77
    %v172 = vpop.f32.mrf.mxu0
    %v173 = vadd.f32 %v62, %v172
    %174 = vmatmul.f32.gmra.mxu0 %v80
    %v175 = vpop.f32.mrf.mxu0
    %v176 = vadd.f32 %v67, %v175
    %177 = vdwg.mxu0
    %178 = vmatpush.msra.mxu0 0.0
    %179 = vmatpush.msra.mxu0 0.0
    %180 = vmatpush.msra.mxu0 0.0
    %181 = vmatpush.msra.mxu0 0.0
    %182 = vmatpush.msra.mxu0 0.0
    %183 = vmatpush.msra.mxu0 0.0
    %184 = vmatpush.msra.mxu0 0.0
    %185 = vmatpush.msra.mxu0 0.0
    %186 = vmatpush.msra.mxu0 0.0
    %187 = vmatpush.msra.mxu0 0.0
    %188 = vmatpush.msra.mxu0 0.0
    %189 = vmatpush.msra.mxu0 0.0
    %190 = vmatpush.msra.mxu0 0.0
    %191 = vmatpush.msra.mxu0 0.0
    %192 = vmatpush.msra.mxu0 0.0
    %193 = vmatpush.msra.mxu0 %v89
    %194 = vmatmul.f32.gmra.mxu0 %v71
    %v195 = vpop.f32.mrf.mxu0
    %v196 = vadd.f32 %v52, %v195
    %197 = vmatmul.f32.gmra.mxu0 %v74
    %v198 = vpop.f32.mrf.mxu0
    %v199 = vadd.f32 %v57, %v198
    %200 = vmatmul.f32.gmra.mxu0 %v77
    %v201 = vpop.f32.mrf.mxu0
    %v202 = vadd.f32 %v62, %v201
    %203 = vmatmul.f32.gmra.mxu0 %v80
    %v204 = vpop.f32.mrf.mxu0
    %v205 = vadd.f32 %v67, %v204
    %206 = vdwg.mxu0
    %v207 = vld [vmem:[%s3] sm:$0xff]
    %v208 = vld [vmem:[%s3 + $0x8] sm:$0xff]
    %v209 = vld [vmem:[%s3 + $0x10] sm:$0xff]
    %v210 = vld [vmem:[%s3 + $0x18] sm:$0xff]
    %v211 = vld [vmem:[%s7] sm:$0xff]
    %v212 = vld [vmem:[%s7 + $0x8] sm:$0xff]
    %v213 = vld [vmem:[%s7 + $0x10] sm:$0xff]
    %v214 = vld [vmem:[%s7 + $0x18] sm:$0xff]
    %v215 = vld [vmem:[%s7 + $0x20] sm:$0x1]
    %v216 = vld [vmem:[%s7 + $0x28] sm:$0x1]
    %v217 = vld [vmem:[%s7 + $0x30] sm:$0x1]
    %v218 = vld [vmem:[%s7 + $0x38] sm:$0x1]
    %220 = vset.pattern.permute.xlu0 4
    %221 = vperm.xlu0 %220, %v207
    %v222 = vpop.permute.xlu0 %221
    %225 = vset.pattern.permute.xlu0 4
    %226 = vperm.xlu0 %225, %v208
    %v227 = vpop.permute.xlu0 %226
    %230 = vset.pattern.permute.xlu0 4
    %231 = vperm.xlu0 %230, %v209
    %v232 = vpop.permute.xlu0 %231
    %235 = vset.pattern.permute.xlu0 4
    %236 = vperm.xlu0 %235, %v210
    %v237 = vpop.permute.xlu0 %236
    %v239 = vmul.f32 %v109, %v222
    %v240 = vmul.f32 %v138, %v222
    %v241 = vmul.f32 %v167, %v222
    %v242 = vmul.f32 %v196, %v222
    %v243 = vmul.f32 %v112, %v227
    %v244 = vmul.f32 %v141, %v227
    %v245 = vmul.f32 %v170, %v227
    %v246 = vmul.f32 %v199, %v227
    %v247 = vmul.f32 %v115, %v232
    %v248 = vmul.f32 %v144, %v232
    %v249 = vmul.f32 %v173, %v232
    %v250 = vmul.f32 %v202, %v232
    %v251 = vmul.f32 %v118, %v237
    %v252 = vmul.f32 %v147, %v237
    %v253 = vmul.f32 %v176, %v237
    %v254 = vmul.f32 %v205, %v237
    %255 = vrot.lane.b32.xlu0 %v109, 17
    %v256 = vpop.permute.xlu0 %255
    %257 = vrot.lane.b32.xlu0 %v112, 17
    %v258 = vpop.permute.xlu0 %257
    %259 = vrot.lane.b32.xlu0 %v115, 17
    %v260 = vpop.permute.xlu0 %259
    %261 = vrot.lane.b32.xlu0 %v118, 17
    %v262 = vpop.permute.xlu0 %261
    %263 = vrot.lane.b32.xlu0 %v138, 17
    %v264 = vpop.permute.xlu0 %263
    %265 = vrot.lane.b32.xlu0 %v141, 17
    %v266 = vpop.permute.xlu0 %265
    %267 = vrot.lane.b32.xlu0 %v144, 17
    %v268 = vpop.permute.xlu0 %267
    %269 = vrot.lane.b32.xlu0 %v147, 17
    %v270 = vpop.permute.xlu0 %269
    %271 = vrot.lane.b32.xlu0 %v167, 17
    %v272 = vpop.permute.xlu0 %271
    %273 = vrot.lane.b32.xlu0 %v170, 17
    %v274 = vpop.permute.xlu0 %273
    %275 = vrot.lane.b32.xlu0 %v173, 17
    %v276 = vpop.permute.xlu0 %275
    %277 = vrot.lane.b32.xlu0 %v176, 17
    %v278 = vpop.permute.xlu0 %277
    %279 = vrot.lane.b32.xlu0 %v196, 17
    %v280 = vpop.permute.xlu0 %279
    %281 = vrot.lane.b32.xlu0 %v199, 17
    %v282 = vpop.permute.xlu0 %281
    %283 = vrot.lane.b32.xlu0 %v202, 17
    %v284 = vpop.permute.xlu0 %283
    %285 = vrot.lane.b32.xlu0 %v205, 17
    %v286 = vpop.permute.xlu0 %285
    %v287 = vlaneseq
    %v288 = vand.u32 %v287, 127
    %vm289 = vcmp.lt.s32.totalorder %v288, 17
    %v290 = vsel %vm289, %v272, %v280
    %v291 = vsel %vm289, %v274, %v282
    %v292 = vsel %vm289, %v276, %v284
    %v293 = vsel %vm289, %v278, %v286
    %v294 = vsel %vm289, %v264, %v272
    %v295 = vsel %vm289, %v266, %v274
    %v296 = vsel %vm289, %v268, %v276
    %v297 = vsel %vm289, %v270, %v278
    %v298 = vsel %vm289, %v256, %v264
    %v299 = vsel %vm289, %v258, %v266
    %v300 = vsel %vm289, %v260, %v268
    %v301 = vsel %vm289, %v262, %v270
    %v302 = vsel %vm289, %v280, %v256
    %v303 = vsel %vm289, %v282, %v258
    %v304 = vsel %vm289, %v284, %v260
    %v305 = vsel %vm289, %v286, %v262
    %v306 = vperm.slane %v211, 0
    %v307 = vperm.slane %v212, 0
    %v308 = vperm.slane %v213, 0
    %v309 = vperm.slane %v214, 0
    %v310 = vmul.f32 %v302, %v306
    %v311 = vmul.f32 %v298, %v307
    %v312 = vmul.f32 %v294, %v308
    %v313 = vmul.f32 %v290, %v309
    %v314 = vmul.f32 %v303, %v306
    %v315 = vmul.f32 %v299, %v307
    %v316 = vmul.f32 %v295, %v308
    %v317 = vmul.f32 %v291, %v309
    %v318 = vmul.f32 %v304, %v306
    %v319 = vmul.f32 %v300, %v307
    %v320 = vmul.f32 %v296, %v308
    %v321 = vmul.f32 %v292, %v309
    %v322 = vmul.f32 %v305, %v306
    %v323 = vmul.f32 %v301, %v307
    %v324 = vmul.f32 %v297, %v308
    %v325 = vmul.f32 %v293, %v309
    %326 = vset.pattern.permute.xlu0 0
    %327 = vperm.xlu0 %326, %v207
    %v328 = vpop.permute.xlu0 %327
    %330 = vset.pattern.permute.xlu0 0
    %331 = vperm.xlu0 %330, %v208
    %v332 = vpop.permute.xlu0 %331
    %334 = vset.pattern.permute.xlu0 0
    %335 = vperm.xlu0 %334, %v209
    %v336 = vpop.permute.xlu0 %335
    %338 = vset.pattern.permute.xlu0 0
    %339 = vperm.xlu0 %338, %v210
    %v340 = vpop.permute.xlu0 %339
    %v342 = vmul.f32 %v310, %v328
    %v343 = vmul.f32 %v311, %v328
    %v344 = vmul.f32 %v312, %v328
    %v345 = vmul.f32 %v313, %v328
    %v346 = vmul.f32 %v314, %v332
    %v347 = vmul.f32 %v315, %v332
    %v348 = vmul.f32 %v316, %v332
    %v349 = vmul.f32 %v317, %v332
    %v350 = vmul.f32 %v318, %v336
    %v351 = vmul.f32 %v319, %v336
    %v352 = vmul.f32 %v320, %v336
    %v353 = vmul.f32 %v321, %v336
    %v354 = vmul.f32 %v322, %v340
    %v355 = vmul.f32 %v323, %v340
    %v356 = vmul.f32 %v324, %v340
    %v357 = vmul.f32 %v325, %v340
    %v358 = vadd.f32 %v239, %v342
    %v359 = vadd.f32 %v240, %v343
    %v360 = vadd.f32 %v241, %v344
    %v361 = vadd.f32 %v242, %v345
    %v362 = vadd.f32 %v243, %v346
    %v363 = vadd.f32 %v244, %v347
    %v364 = vadd.f32 %v245, %v348
    %v365 = vadd.f32 %v246, %v349
    %v366 = vadd.f32 %v247, %v350
    %v367 = vadd.f32 %v248, %v351
    %v368 = vadd.f32 %v249, %v352
    %v369 = vadd.f32 %v250, %v353
    %v370 = vadd.f32 %v251, %v354
    %v371 = vadd.f32 %v252, %v355
    %v372 = vadd.f32 %v253, %v356
    %v373 = vadd.f32 %v254, %v357
    %374 = vrot.lane.b32.xlu0 %v109, 16
    %v375 = vpop.permute.xlu0 %374
    %376 = vrot.lane.b32.xlu0 %v112, 16
    %v377 = vpop.permute.xlu0 %376
    %378 = vrot.lane.b32.xlu0 %v115, 16
    %v379 = vpop.permute.xlu0 %378
    %380 = vrot.lane.b32.xlu0 %v118, 16
    %v381 = vpop.permute.xlu0 %380
    %382 = vrot.lane.b32.xlu0 %v138, 16
    %v383 = vpop.permute.xlu0 %382
    %384 = vrot.lane.b32.xlu0 %v141, 16
    %v385 = vpop.permute.xlu0 %384
    %386 = vrot.lane.b32.xlu0 %v144, 16
    %v387 = vpop.permute.xlu0 %386
    %388 = vrot.lane.b32.xlu0 %v147, 16
    %v389 = vpop.permute.xlu0 %388
    %390 = vrot.lane.b32.xlu0 %v167, 16
    %v391 = vpop.permute.xlu0 %390
    %392 = vrot.lane.b32.xlu0 %v170, 16
    %v393 = vpop.permute.xlu0 %392
    %394 = vrot.lane.b32.xlu0 %v173, 16
    %v395 = vpop.permute.xlu0 %394
    %396 = vrot.lane.b32.xlu0 %v176, 16
    %v397 = vpop.permute.xlu0 %396
    %398 = vrot.lane.b32.xlu0 %v196, 16
    %v399 = vpop.permute.xlu0 %398
    %400 = vrot.lane.b32.xlu0 %v199, 16
    %v401 = vpop.permute.xlu0 %400
    %402 = vrot.lane.b32.xlu0 %v202, 16
    %v403 = vpop.permute.xlu0 %402
    %404 = vrot.lane.b32.xlu0 %v205, 16
    %v405 = vpop.permute.xlu0 %404
    %vm406 = vcmp.lt.s32.totalorder %v288, 16
    %v407 = vsel %vm406, %v391, %v399
    %v408 = vsel %vm406, %v393, %v401
    %v409 = vsel %vm406, %v395, %v403
    %v410 = vsel %vm406, %v397, %v405
    %v411 = vsel %vm406, %v383, %v391
    %v412 = vsel %vm406, %v385, %v393
    %v413 = vsel %vm406, %v387, %v395
    %v414 = vsel %vm406, %v389, %v397
    %v415 = vsel %vm406, %v375, %v383
    %v416 = vsel %vm406, %v377, %v385
    %v417 = vsel %vm406, %v379, %v387
    %v418 = vsel %vm406, %v381, %v389
    %v419 = vsel %vm406, %v399, %v375
    %v420 = vsel %vm406, %v401, %v377
    %v421 = vsel %vm406, %v403, %v379
    %v422 = vsel %vm406, %v405, %v381
    %v423 = vperm.slane %v211, 1
    %v424 = vperm.slane %v212, 1
    %v425 = vperm.slane %v213, 1
    %v426 = vperm.slane %v214, 1
    %v427 = vmul.f32 %v419, %v423
    %v428 = vmul.f32 %v415, %v424
    %v429 = vmul.f32 %v411, %v425
    %v430 = vmul.f32 %v407, %v426
    %v431 = vmul.f32 %v420, %v423
    %v432 = vmul.f32 %v416, %v424
    %v433 = vmul.f32 %v412, %v425
    %v434 = vmul.f32 %v408, %v426
    %v435 = vmul.f32 %v421, %v423
    %v436 = vmul.f32 %v417, %v424
    %v437 = vmul.f32 %v413, %v425
    %v438 = vmul.f32 %v409, %v426
    %v439 = vmul.f32 %v422, %v423
    %v440 = vmul.f32 %v418, %v424
    %v441 = vmul.f32 %v414, %v425
    %v442 = vmul.f32 %v410, %v426
    %443 = vset.pattern.permute.xlu0 1
    %444 = vperm.xlu0 %443, %v207
    %v445 = vpop.permute.xlu0 %444
    %447 = vset.pattern.permute.xlu0 1
    %448 = vperm.xlu0 %447, %v208
    %v449 = vpop.permute.xlu0 %448
    %451 = vset.pattern.permute.xlu0 1
    %452 = vperm.xlu0 %451, %v209
    %v453 = vpop.permute.xlu0 %452
    %455 = vset.pattern.permute.xlu0 1
    %456 = vperm.xlu0 %455, %v210
    %v457 = vpop.permute.xlu0 %456
    %v459 = vmul.f32 %v427, %v445
    %v460 = vmul.f32 %v428, %v445
    %v461 = vmul.f32 %v429, %v445
    %v462 = vmul.f32 %v430, %v445
    %v463 = vmul.f32 %v431, %v449
    %v464 = vmul.f32 %v432, %v449
    %v465 = vmul.f32 %v433, %v449
    %v466 = vmul.f32 %v434, %v449
    %v467 = vmul.f32 %v435, %v453
    %v468 = vmul.f32 %v436, %v453
    %v469 = vmul.f32 %v437, %v453
    %v470 = vmul.f32 %v438, %v453
    %v471 = vmul.f32 %v439, %v457
    %v472 = vmul.f32 %v440, %v457
    %v473 = vmul.f32 %v441, %v457
    %v474 = vmul.f32 %v442, %v457
    %v475 = vadd.f32 %v358, %v459
    %v476 = vadd.f32 %v359, %v460
    %v477 = vadd.f32 %v360, %v461
    %v478 = vadd.f32 %v361, %v462
    %v479 = vadd.f32 %v362, %v463
    %v480 = vadd.f32 %v363, %v464
    %v481 = vadd.f32 %v364, %v465
    %v482 = vadd.f32 %v365, %v466
    %v483 = vadd.f32 %v366, %v467
    %v484 = vadd.f32 %v367, %v468
    %v485 = vadd.f32 %v368, %v469
    %v486 = vadd.f32 %v369, %v470
    %v487 = vadd.f32 %v370, %v471
    %v488 = vadd.f32 %v371, %v472
    %v489 = vadd.f32 %v372, %v473
    %v490 = vadd.f32 %v373, %v474
    %491 = vrot.lane.b32.xlu0 %v109, 15
    %v492 = vpop.permute.xlu0 %491
    %493 = vrot.lane.b32.xlu0 %v112, 15
    %v494 = vpop.permute.xlu0 %493
    %495 = vrot.lane.b32.xlu0 %v115, 15
    %v496 = vpop.permute.xlu0 %495
    %497 = vrot.lane.b32.xlu0 %v118, 15
    %v498 = vpop.permute.xlu0 %497
    %499 = vrot.lane.b32.xlu0 %v138, 15
    %v500 = vpop.permute.xlu0 %499
    %501 = vrot.lane.b32.xlu0 %v141, 15
    %v502 = vpop.permute.xlu0 %501
    %503 = vrot.lane.b32.xlu0 %v144, 15
    %v504 = vpop.permute.xlu0 %503
    %505 = vrot.lane.b32.xlu0 %v147, 15
    %v506 = vpop.permute.xlu0 %505
    %507 = vrot.lane.b32.xlu0 %v167, 15
    %v508 = vpop.permute.xlu0 %507
    %509 = vrot.lane.b32.xlu0 %v170, 15
    %v510 = vpop.permute.xlu0 %509
    %511 = vrot.lane.b32.xlu0 %v173, 15
    %v512 = vpop.permute.xlu0 %511
    %513 = vrot.lane.b32.xlu0 %v176, 15
    %v514 = vpop.permute.xlu0 %513
    %515 = vrot.lane.b32.xlu0 %v196, 15
    %v516 = vpop.permute.xlu0 %515
    %517 = vrot.lane.b32.xlu0 %v199, 15
    %v518 = vpop.permute.xlu0 %517
    %519 = vrot.lane.b32.xlu0 %v202, 15
    %v520 = vpop.permute.xlu0 %519
    %521 = vrot.lane.b32.xlu0 %v205, 15
    %v522 = vpop.permute.xlu0 %521
    %vm523 = vcmp.lt.s32.totalorder %v288, 15
    %v524 = vsel %vm523, %v508, %v516
    %v525 = vsel %vm523, %v510, %v518
    %v526 = vsel %vm523, %v512, %v520
    %v527 = vsel %vm523, %v514, %v522
    %v528 = vsel %vm523, %v500, %v508
    %v529 = vsel %vm523, %v502, %v510
    %v530 = vsel %vm523, %v504, %v512
    %v531 = vsel %vm523, %v506, %v514
    %v532 = vsel %vm523, %v492, %v500
    %v533 = vsel %vm523, %v494, %v502
    %v534 = vsel %vm523, %v496, %v504
    %v535 = vsel %vm523, %v498, %v506
    %v536 = vsel %vm523, %v516, %v492
    %v537 = vsel %vm523, %v518, %v494
    %v538 = vsel %vm523, %v520, %v496
    %v539 = vsel %vm523, %v522, %v498
    %v540 = vperm.slane %v211, 2
    %v541 = vperm.slane %v212, 2
    %v542 = vperm.slane %v213, 2
    %v543 = vperm.slane %v214, 2
    %v544 = vmul.f32 %v536, %v540
    %v545 = vmul.f32 %v532, %v541
    %v546 = vmul.f32 %v528, %v542
    %v547 = vmul.f32 %v524, %v543
    %v548 = vmul.f32 %v537, %v540
    %v549 = vmul.f32 %v533, %v541
    %v550 = vmul.f32 %v529, %v542
    %v551 = vmul.f32 %v525, %v543
    %v552 = vmul.f32 %v538, %v540
    %v553 = vmul.f32 %v534, %v541
    %v554 = vmul.f32 %v530, %v542
    %v555 = vmul.f32 %v526, %v543
    %v556 = vmul.f32 %v539, %v540
    %v557 = vmul.f32 %v535, %v541
    %v558 = vmul.f32 %v531, %v542
    %v559 = vmul.f32 %v527, %v543
    %560 = vset.pattern.permute.xlu0 2
    %561 = vperm.xlu0 %560, %v207
    %v562 = vpop.permute.xlu0 %561
    %564 = vset.pattern.permute.xlu0 2
    %565 = vperm.xlu0 %564, %v208
    %v566 = vpop.permute.xlu0 %565
    %568 = vset.pattern.permute.xlu0 2
    %569 = vperm.xlu0 %568, %v209
    %v570 = vpop.permute.xlu0 %569
    %572 = vset.pattern.permute.xlu0 2
    %573 = vperm.xlu0 %572, %v210
    %v574 = vpop.permute.xlu0 %573
    %v576 = vmul.f32 %v544, %v562
    %v577 = vmul.f32 %v545, %v562
    %v578 = vmul.f32 %v546, %v562
    %v579 = vmul.f32 %v547, %v562
    %v580 = vmul.f32 %v548, %v566
    %v581 = vmul.f32 %v549, %v566
    %v582 = vmul.f32 %v550, %v566
    %v583 = vmul.f32 %v551, %v566
    %v584 = vmul.f32 %v552, %v570
    %v585 = vmul.f32 %v553, %v570
    %v586 = vmul.f32 %v554, %v570
    %v587 = vmul.f32 %v555, %v570
    %v588 = vmul.f32 %v556, %v574
    %v589 = vmul.f32 %v557, %v574
    %v590 = vmul.f32 %v558, %v574
    %v591 = vmul.f32 %v559, %v574
    %v592 = vadd.f32 %v475, %v576
    %v593 = vadd.f32 %v476, %v577
    %v594 = vadd.f32 %v477, %v578
    %v595 = vadd.f32 %v478, %v579
    %v596 = vadd.f32 %v479, %v580
    %v597 = vadd.f32 %v480, %v581
    %v598 = vadd.f32 %v481, %v582
    %v599 = vadd.f32 %v482, %v583
    %v600 = vadd.f32 %v483, %v584
    %v601 = vadd.f32 %v484, %v585
    %v602 = vadd.f32 %v485, %v586
    %v603 = vadd.f32 %v486, %v587
    %v604 = vadd.f32 %v487, %v588
    %v605 = vadd.f32 %v488, %v589
    %v606 = vadd.f32 %v489, %v590
    %v607 = vadd.f32 %v490, %v591
    %608 = vrot.lane.b32.xlu0 %v109, 1
    %v609 = vpop.permute.xlu0 %608
    %610 = vrot.lane.b32.xlu0 %v112, 1
    %v611 = vpop.permute.xlu0 %610
    %612 = vrot.lane.b32.xlu0 %v115, 1
    %v613 = vpop.permute.xlu0 %612
    %614 = vrot.lane.b32.xlu0 %v118, 1
    %v615 = vpop.permute.xlu0 %614
    %616 = vrot.lane.b32.xlu0 %v138, 1
    %v617 = vpop.permute.xlu0 %616
    %618 = vrot.lane.b32.xlu0 %v141, 1
    %v619 = vpop.permute.xlu0 %618
    %620 = vrot.lane.b32.xlu0 %v144, 1
    %v621 = vpop.permute.xlu0 %620
    %622 = vrot.lane.b32.xlu0 %v147, 1
    %v623 = vpop.permute.xlu0 %622
    %624 = vrot.lane.b32.xlu0 %v167, 1
    %v625 = vpop.permute.xlu0 %624
    %626 = vrot.lane.b32.xlu0 %v170, 1
    %v627 = vpop.permute.xlu0 %626
    %628 = vrot.lane.b32.xlu0 %v173, 1
    %v629 = vpop.permute.xlu0 %628
    %630 = vrot.lane.b32.xlu0 %v176, 1
    %v631 = vpop.permute.xlu0 %630
    %632 = vrot.lane.b32.xlu0 %v196, 1
    %v633 = vpop.permute.xlu0 %632
    %634 = vrot.lane.b32.xlu0 %v199, 1
    %v635 = vpop.permute.xlu0 %634
    %636 = vrot.lane.b32.xlu0 %v202, 1
    %v637 = vpop.permute.xlu0 %636
    %638 = vrot.lane.b32.xlu0 %v205, 1
    %v639 = vpop.permute.xlu0 %638
    %vm640 = vcmp.lt.s32.totalorder %v288, 1
    %v641 = vsel %vm640, %v625, %v633
    %v642 = vsel %vm640, %v627, %v635
    %v643 = vsel %vm640, %v629, %v637
    %v644 = vsel %vm640, %v631, %v639
    %v645 = vsel %vm640, %v617, %v625
    %v646 = vsel %vm640, %v619, %v627
    %v647 = vsel %vm640, %v621, %v629
    %v648 = vsel %vm640, %v623, %v631
    %v649 = vsel %vm640, %v609, %v617
    %v650 = vsel %vm640, %v611, %v619
    %v651 = vsel %vm640, %v613, %v621
    %v652 = vsel %vm640, %v615, %v623
    %v653 = vsel %vm640, %v633, %v609
    %v654 = vsel %vm640, %v635, %v611
    %v655 = vsel %vm640, %v637, %v613
    %v656 = vsel %vm640, %v639, %v615
    %v657 = vperm.slane %v211, 3
    %v658 = vperm.slane %v212, 3
    %v659 = vperm.slane %v213, 3
    %v660 = vperm.slane %v214, 3
    %v661 = vmul.f32 %v653, %v657
    %v662 = vmul.f32 %v649, %v658
    %v663 = vmul.f32 %v645, %v659
    %v664 = vmul.f32 %v641, %v660
    %v665 = vmul.f32 %v654, %v657
    %v666 = vmul.f32 %v650, %v658
    %v667 = vmul.f32 %v646, %v659
    %v668 = vmul.f32 %v642, %v660
    %v669 = vmul.f32 %v655, %v657
    %v670 = vmul.f32 %v651, %v658
    %v671 = vmul.f32 %v647, %v659
    %v672 = vmul.f32 %v643, %v660
    %v673 = vmul.f32 %v656, %v657
    %v674 = vmul.f32 %v652, %v658
    %v675 = vmul.f32 %v648, %v659
    %v676 = vmul.f32 %v644, %v660
    %677 = vset.pattern.permute.xlu0 3
    %678 = vperm.xlu0 %677, %v207
    %v679 = vpop.permute.xlu0 %678
    %681 = vset.pattern.permute.xlu0 3
    %682 = vperm.xlu0 %681, %v208
    %v683 = vpop.permute.xlu0 %682
    %685 = vset.pattern.permute.xlu0 3
    %686 = vperm.xlu0 %685, %v209
    %v687 = vpop.permute.xlu0 %686
    %689 = vset.pattern.permute.xlu0 3
    %690 = vperm.xlu0 %689, %v210
    %v691 = vpop.permute.xlu0 %690
    %v693 = vmul.f32 %v661, %v679
    %v694 = vmul.f32 %v662, %v679
    %v695 = vmul.f32 %v663, %v679
    %v696 = vmul.f32 %v664, %v679
    %v697 = vmul.f32 %v665, %v683
    %v698 = vmul.f32 %v666, %v683
    %v699 = vmul.f32 %v667, %v683
    %v700 = vmul.f32 %v668, %v683
    %v701 = vmul.f32 %v669, %v687
    %v702 = vmul.f32 %v670, %v687
    %v703 = vmul.f32 %v671, %v687
    %v704 = vmul.f32 %v672, %v687
    %v705 = vmul.f32 %v673, %v691
    %v706 = vmul.f32 %v674, %v691
    %v707 = vmul.f32 %v675, %v691
    %v708 = vmul.f32 %v676, %v691
    %v709 = vadd.f32 %v592, %v693
    %v710 = vadd.f32 %v593, %v694
    %v711 = vadd.f32 %v594, %v695
    %v712 = vadd.f32 %v595, %v696
    %v713 = vadd.f32 %v596, %v697
    %v714 = vadd.f32 %v597, %v698
    %v715 = vadd.f32 %v598, %v699
    %v716 = vadd.f32 %v599, %v700
    %v717 = vadd.f32 %v600, %v701
    %v718 = vadd.f32 %v601, %v702
    %v719 = vadd.f32 %v602, %v703
    %v720 = vadd.f32 %v603, %v704
    %v721 = vadd.f32 %v604, %v705
    %v722 = vadd.f32 %v605, %v706
    %v723 = vadd.f32 %v606, %v707
    %v724 = vadd.f32 %v607, %v708
    %725 = vrot.lane.b32.xlu0 %v109, 127
    %v726 = vpop.permute.xlu0 %725
    %727 = vrot.lane.b32.xlu0 %v112, 127
    %v728 = vpop.permute.xlu0 %727
    %729 = vrot.lane.b32.xlu0 %v115, 127
    %v730 = vpop.permute.xlu0 %729
    %731 = vrot.lane.b32.xlu0 %v118, 127
    %v732 = vpop.permute.xlu0 %731
    %733 = vrot.lane.b32.xlu0 %v138, 127
    %v734 = vpop.permute.xlu0 %733
    %735 = vrot.lane.b32.xlu0 %v141, 127
    %v736 = vpop.permute.xlu0 %735
    %737 = vrot.lane.b32.xlu0 %v144, 127
    %v738 = vpop.permute.xlu0 %737
    %739 = vrot.lane.b32.xlu0 %v147, 127
    %v740 = vpop.permute.xlu0 %739
    %741 = vrot.lane.b32.xlu0 %v167, 127
    %v742 = vpop.permute.xlu0 %741
    %743 = vrot.lane.b32.xlu0 %v170, 127
    %v744 = vpop.permute.xlu0 %743
    %745 = vrot.lane.b32.xlu0 %v173, 127
    %v746 = vpop.permute.xlu0 %745
    %747 = vrot.lane.b32.xlu0 %v176, 127
    %v748 = vpop.permute.xlu0 %747
    %749 = vrot.lane.b32.xlu0 %v196, 127
    %v750 = vpop.permute.xlu0 %749
    %751 = vrot.lane.b32.xlu0 %v199, 127
    %v752 = vpop.permute.xlu0 %751
    %753 = vrot.lane.b32.xlu0 %v202, 127
    %v754 = vpop.permute.xlu0 %753
    %755 = vrot.lane.b32.xlu0 %v205, 127
    %v756 = vpop.permute.xlu0 %755
    %vm757 = vcmp.lt.s32.totalorder %v288, 127
    %v758 = vsel %vm757, %v742, %v750
    %v759 = vsel %vm757, %v744, %v752
    %v760 = vsel %vm757, %v746, %v754
    %v761 = vsel %vm757, %v748, %v756
    %v762 = vsel %vm757, %v734, %v742
    %v763 = vsel %vm757, %v736, %v744
    %v764 = vsel %vm757, %v738, %v746
    %v765 = vsel %vm757, %v740, %v748
    %v766 = vsel %vm757, %v726, %v734
    %v767 = vsel %vm757, %v728, %v736
    %v768 = vsel %vm757, %v730, %v738
    %v769 = vsel %vm757, %v732, %v740
    %v770 = vsel %vm757, %v750, %v726
    %v771 = vsel %vm757, %v752, %v728
    %v772 = vsel %vm757, %v754, %v730
    %v773 = vsel %vm757, %v756, %v732
    %v774 = vperm.slane %v211, 5
    %v775 = vperm.slane %v212, 5
    %v776 = vperm.slane %v213, 5
    %v777 = vperm.slane %v214, 5
    %v778 = vmul.f32 %v766, %v774
    %v779 = vmul.f32 %v762, %v775
    %v780 = vmul.f32 %v758, %v776
    %v781 = vmul.f32 %v770, %v777
    %v782 = vmul.f32 %v767, %v774
    %v783 = vmul.f32 %v763, %v775
    %v784 = vmul.f32 %v759, %v776
    %v785 = vmul.f32 %v771, %v777
    %v786 = vmul.f32 %v768, %v774
    %v787 = vmul.f32 %v764, %v775
    %v788 = vmul.f32 %v760, %v776
    %v789 = vmul.f32 %v772, %v777
    %v790 = vmul.f32 %v769, %v774
    %v791 = vmul.f32 %v765, %v775
    %v792 = vmul.f32 %v761, %v776
    %v793 = vmul.f32 %v773, %v777
    %794 = vset.pattern.permute.xlu0 5
    %795 = vperm.xlu0 %794, %v207
    %v796 = vpop.permute.xlu0 %795
    %798 = vset.pattern.permute.xlu0 5
    %799 = vperm.xlu0 %798, %v208
    %v800 = vpop.permute.xlu0 %799
    %802 = vset.pattern.permute.xlu0 5
    %803 = vperm.xlu0 %802, %v209
    %v804 = vpop.permute.xlu0 %803
    %806 = vset.pattern.permute.xlu0 5
    %807 = vperm.xlu0 %806, %v210
    %v808 = vpop.permute.xlu0 %807
    %v810 = vmul.f32 %v778, %v796
    %v811 = vmul.f32 %v779, %v796
    %v812 = vmul.f32 %v780, %v796
    %v813 = vmul.f32 %v781, %v796
    %v814 = vmul.f32 %v782, %v800
    %v815 = vmul.f32 %v783, %v800
    %v816 = vmul.f32 %v784, %v800
    %v817 = vmul.f32 %v785, %v800
    %v818 = vmul.f32 %v786, %v804
    %v819 = vmul.f32 %v787, %v804
    %v820 = vmul.f32 %v788, %v804
    %v821 = vmul.f32 %v789, %v804
    %v822 = vmul.f32 %v790, %v808
    %v823 = vmul.f32 %v791, %v808
    %v824 = vmul.f32 %v792, %v808
    %v825 = vmul.f32 %v793, %v808
    %v826 = vadd.f32 %v709, %v810
    %v827 = vadd.f32 %v710, %v811
    %v828 = vadd.f32 %v711, %v812
    %v829 = vadd.f32 %v712, %v813
    %v830 = vadd.f32 %v713, %v814
    %v831 = vadd.f32 %v714, %v815
    %v832 = vadd.f32 %v715, %v816
    %v833 = vadd.f32 %v716, %v817
    %v834 = vadd.f32 %v717, %v818
    %v835 = vadd.f32 %v718, %v819
    %v836 = vadd.f32 %v719, %v820
    %v837 = vadd.f32 %v720, %v821
    %v838 = vadd.f32 %v721, %v822
    %v839 = vadd.f32 %v722, %v823
    %v840 = vadd.f32 %v723, %v824
    %v841 = vadd.f32 %v724, %v825
    %842 = vrot.lane.b32.xlu0 %v109, 113
    %v843 = vpop.permute.xlu0 %842
    %844 = vrot.lane.b32.xlu0 %v112, 113
    %v845 = vpop.permute.xlu0 %844
    %846 = vrot.lane.b32.xlu0 %v115, 113
    %v847 = vpop.permute.xlu0 %846
    %848 = vrot.lane.b32.xlu0 %v118, 113
    %v849 = vpop.permute.xlu0 %848
    %850 = vrot.lane.b32.xlu0 %v138, 113
    %v851 = vpop.permute.xlu0 %850
    %852 = vrot.lane.b32.xlu0 %v141, 113
    %v853 = vpop.permute.xlu0 %852
    %854 = vrot.lane.b32.xlu0 %v144, 113
    %v855 = vpop.permute.xlu0 %854
    %856 = vrot.lane.b32.xlu0 %v147, 113
    %v857 = vpop.permute.xlu0 %856
    %858 = vrot.lane.b32.xlu0 %v167, 113
    %v859 = vpop.permute.xlu0 %858
    %860 = vrot.lane.b32.xlu0 %v170, 113
    %v861 = vpop.permute.xlu0 %860
    %862 = vrot.lane.b32.xlu0 %v173, 113
    %v863 = vpop.permute.xlu0 %862
    %864 = vrot.lane.b32.xlu0 %v176, 113
    %v865 = vpop.permute.xlu0 %864
    %866 = vrot.lane.b32.xlu0 %v196, 113
    %v867 = vpop.permute.xlu0 %866
    %868 = vrot.lane.b32.xlu0 %v199, 113
    %v869 = vpop.permute.xlu0 %868
    %870 = vrot.lane.b32.xlu0 %v202, 113
    %v871 = vpop.permute.xlu0 %870
    %872 = vrot.lane.b32.xlu0 %v205, 113
    %v873 = vpop.permute.xlu0 %872
    %vm874 = vcmp.lt.s32.totalorder %v288, 113
    %v875 = vsel %vm874, %v859, %v867
    %v876 = vsel %vm874, %v861, %v869
    %v877 = vsel %vm874, %v863, %v871
    %v878 = vsel %vm874, %v865, %v873
    %v879 = vsel %vm874, %v851, %v859
    %v880 = vsel %vm874, %v853, %v861
    %v881 = vsel %vm874, %v855, %v863
    %v882 = vsel %vm874, %v857, %v865
    %v883 = vsel %vm874, %v843, %v851
    %v884 = vsel %vm874, %v845, %v853
    %v885 = vsel %vm874, %v847, %v855
    %v886 = vsel %vm874, %v849, %v857
    %v887 = vsel %vm874, %v867, %v843
    %v888 = vsel %vm874, %v869, %v845
    %v889 = vsel %vm874, %v871, %v847
    %v890 = vsel %vm874, %v873, %v849
    %v891 = vperm.slane %v211, 6
    %v892 = vperm.slane %v212, 6
    %v893 = vperm.slane %v213, 6
    %v894 = vperm.slane %v214, 6
    %v895 = vmul.f32 %v883, %v891
    %v896 = vmul.f32 %v879, %v892
    %v897 = vmul.f32 %v875, %v893
    %v898 = vmul.f32 %v887, %v894
    %v899 = vmul.f32 %v884, %v891
    %v900 = vmul.f32 %v880, %v892
    %v901 = vmul.f32 %v876, %v893
    %v902 = vmul.f32 %v888, %v894
    %v903 = vmul.f32 %v885, %v891
    %v904 = vmul.f32 %v881, %v892
    %v905 = vmul.f32 %v877, %v893
    %v906 = vmul.f32 %v889, %v894
    %v907 = vmul.f32 %v886, %v891
    %v908 = vmul.f32 %v882, %v892
    %v909 = vmul.f32 %v878, %v893
    %v910 = vmul.f32 %v890, %v894
    %911 = vset.pattern.permute.xlu0 6
    %912 = vperm.xlu0 %911, %v207
    %v913 = vpop.permute.xlu0 %912
    %915 = vset.pattern.permute.xlu0 6
    %916 = vperm.xlu0 %915, %v208
    %v917 = vpop.permute.xlu0 %916
    %919 = vset.pattern.permute.xlu0 6
    %920 = vperm.xlu0 %919, %v209
    %v921 = vpop.permute.xlu0 %920
    %923 = vset.pattern.permute.xlu0 6
    %924 = vperm.xlu0 %923, %v210
    %v925 = vpop.permute.xlu0 %924
    %v927 = vmul.f32 %v895, %v913
    %v928 = vmul.f32 %v896, %v913
    %v929 = vmul.f32 %v897, %v913
    %v930 = vmul.f32 %v898, %v913
    %v931 = vmul.f32 %v899, %v917
    %v932 = vmul.f32 %v900, %v917
    %v933 = vmul.f32 %v901, %v917
    %v934 = vmul.f32 %v902, %v917
    %v935 = vmul.f32 %v903, %v921
    %v936 = vmul.f32 %v904, %v921
    %v937 = vmul.f32 %v905, %v921
    %v938 = vmul.f32 %v906, %v921
    %v939 = vmul.f32 %v907, %v925
    %v940 = vmul.f32 %v908, %v925
    %v941 = vmul.f32 %v909, %v925
    %v942 = vmul.f32 %v910, %v925
    %v943 = vadd.f32 %v826, %v927
    %v944 = vadd.f32 %v827, %v928
    %v945 = vadd.f32 %v828, %v929
    %v946 = vadd.f32 %v829, %v930
    %v947 = vadd.f32 %v830, %v931
    %v948 = vadd.f32 %v831, %v932
    %v949 = vadd.f32 %v832, %v933
    %v950 = vadd.f32 %v833, %v934
    %v951 = vadd.f32 %v834, %v935
    %v952 = vadd.f32 %v835, %v936
    %v953 = vadd.f32 %v836, %v937
    %v954 = vadd.f32 %v837, %v938
    %v955 = vadd.f32 %v838, %v939
    %v956 = vadd.f32 %v839, %v940
    %v957 = vadd.f32 %v840, %v941
    %v958 = vadd.f32 %v841, %v942
    %959 = vrot.lane.b32.xlu0 %v109, 112
    %v960 = vpop.permute.xlu0 %959
    %961 = vrot.lane.b32.xlu0 %v112, 112
    %v962 = vpop.permute.xlu0 %961
    %963 = vrot.lane.b32.xlu0 %v115, 112
    %v964 = vpop.permute.xlu0 %963
    %965 = vrot.lane.b32.xlu0 %v118, 112
    %v966 = vpop.permute.xlu0 %965
    %967 = vrot.lane.b32.xlu0 %v138, 112
    %v968 = vpop.permute.xlu0 %967
    %969 = vrot.lane.b32.xlu0 %v141, 112
    %v970 = vpop.permute.xlu0 %969
    %971 = vrot.lane.b32.xlu0 %v144, 112
    %v972 = vpop.permute.xlu0 %971
    %973 = vrot.lane.b32.xlu0 %v147, 112
    %v974 = vpop.permute.xlu0 %973
    %975 = vrot.lane.b32.xlu0 %v167, 112
    %v976 = vpop.permute.xlu0 %975
    %977 = vrot.lane.b32.xlu0 %v170, 112
    %v978 = vpop.permute.xlu0 %977
    %979 = vrot.lane.b32.xlu0 %v173, 112
    %v980 = vpop.permute.xlu0 %979
    %981 = vrot.lane.b32.xlu0 %v176, 112
    %v982 = vpop.permute.xlu0 %981
    %983 = vrot.lane.b32.xlu0 %v196, 112
    %v984 = vpop.permute.xlu0 %983
    %985 = vrot.lane.b32.xlu0 %v199, 112
    %v986 = vpop.permute.xlu0 %985
    %987 = vrot.lane.b32.xlu0 %v202, 112
    %v988 = vpop.permute.xlu0 %987
    %989 = vrot.lane.b32.xlu0 %v205, 112
    %v990 = vpop.permute.xlu0 %989
    %vm991 = vcmp.lt.s32.totalorder %v288, 112
    %v992 = vsel %vm991, %v976, %v984
    %v993 = vsel %vm991, %v978, %v986
    %v994 = vsel %vm991, %v980, %v988
    %v995 = vsel %vm991, %v982, %v990
    %v996 = vsel %vm991, %v968, %v976
    %v997 = vsel %vm991, %v970, %v978
    %v998 = vsel %vm991, %v972, %v980
    %v999 = vsel %vm991, %v974, %v982
    %v1000 = vsel %vm991, %v960, %v968
    %v1001 = vsel %vm991, %v962, %v970
    %v1002 = vsel %vm991, %v964, %v972
    %v1003 = vsel %vm991, %v966, %v974
    %v1004 = vsel %vm991, %v984, %v960
    %v1005 = vsel %vm991, %v986, %v962
    %v1006 = vsel %vm991, %v988, %v964
    %v1007 = vsel %vm991, %v990, %v966
    %v1008 = vperm.slane %v211, 7
    %v1009 = vperm.slane %v212, 7
    %v1010 = vperm.slane %v213, 7
    %v1011 = vperm.slane %v214, 7
    %v1012 = vmul.f32 %v1000, %v1008
    %v1013 = vmul.f32 %v996, %v1009
    %v1014 = vmul.f32 %v992, %v1010
    %v1015 = vmul.f32 %v1004, %v1011
    %v1016 = vmul.f32 %v1001, %v1008
    %v1017 = vmul.f32 %v997, %v1009
    %v1018 = vmul.f32 %v993, %v1010
    %v1019 = vmul.f32 %v1005, %v1011
    %v1020 = vmul.f32 %v1002, %v1008
    %v1021 = vmul.f32 %v998, %v1009
    %v1022 = vmul.f32 %v994, %v1010
    %v1023 = vmul.f32 %v1006, %v1011
    %v1024 = vmul.f32 %v1003, %v1008
    %v1025 = vmul.f32 %v999, %v1009
    %v1026 = vmul.f32 %v995, %v1010
    %v1027 = vmul.f32 %v1007, %v1011
    %1028 = vset.pattern.permute.xlu0 7
    %1029 = vperm.xlu0 %1028, %v207
    %v1030 = vpop.permute.xlu0 %1029
    %1032 = vset.pattern.permute.xlu0 7
    %1033 = vperm.xlu0 %1032, %v208
    %v1034 = vpop.permute.xlu0 %1033
    %1036 = vset.pattern.permute.xlu0 7
    %1037 = vperm.xlu0 %1036, %v209
    %v1038 = vpop.permute.xlu0 %1037
    %1040 = vset.pattern.permute.xlu0 7
    %1041 = vperm.xlu0 %1040, %v210
    %v1042 = vpop.permute.xlu0 %1041
    %v1044 = vmul.f32 %v1012, %v1030
    %v1045 = vmul.f32 %v1013, %v1030
    %v1046 = vmul.f32 %v1014, %v1030
    %v1047 = vmul.f32 %v1015, %v1030
    %v1048 = vmul.f32 %v1016, %v1034
    %v1049 = vmul.f32 %v1017, %v1034
    %v1050 = vmul.f32 %v1018, %v1034
    %v1051 = vmul.f32 %v1019, %v1034
    %v1052 = vmul.f32 %v1020, %v1038
    %v1053 = vmul.f32 %v1021, %v1038
    %v1054 = vmul.f32 %v1022, %v1038
    %v1055 = vmul.f32 %v1023, %v1038
    %v1056 = vmul.f32 %v1024, %v1042
    %v1057 = vmul.f32 %v1025, %v1042
    %v1058 = vmul.f32 %v1026, %v1042
    %v1059 = vmul.f32 %v1027, %v1042
    %v1060 = vadd.f32 %v943, %v1044
    %v1061 = vadd.f32 %v944, %v1045
    %v1062 = vadd.f32 %v945, %v1046
    %v1063 = vadd.f32 %v946, %v1047
    %v1064 = vadd.f32 %v947, %v1048
    %v1065 = vadd.f32 %v948, %v1049
    %v1066 = vadd.f32 %v949, %v1050
    %v1067 = vadd.f32 %v950, %v1051
    %v1068 = vadd.f32 %v951, %v1052
    %v1069 = vadd.f32 %v952, %v1053
    %v1070 = vadd.f32 %v953, %v1054
    %v1071 = vadd.f32 %v954, %v1055
    %v1072 = vadd.f32 %v955, %v1056
    %v1073 = vadd.f32 %v956, %v1057
    %v1074 = vadd.f32 %v957, %v1058
    %v1075 = vadd.f32 %v958, %v1059
    %1076 = vrot.lane.b32.xlu0 %v109, 111
    %v1077 = vpop.permute.xlu0 %1076
    %1078 = vrot.lane.b32.xlu0 %v112, 111
    %v1079 = vpop.permute.xlu0 %1078
    %1080 = vrot.lane.b32.xlu0 %v115, 111
    %v1081 = vpop.permute.xlu0 %1080
    %1082 = vrot.lane.b32.xlu0 %v118, 111
    %v1083 = vpop.permute.xlu0 %1082
    %1084 = vrot.lane.b32.xlu0 %v138, 111
    %v1085 = vpop.permute.xlu0 %1084
    %1086 = vrot.lane.b32.xlu0 %v141, 111
    %v1087 = vpop.permute.xlu0 %1086
    %1088 = vrot.lane.b32.xlu0 %v144, 111
    %v1089 = vpop.permute.xlu0 %1088
    %1090 = vrot.lane.b32.xlu0 %v147, 111
    %v1091 = vpop.permute.xlu0 %1090
    %1092 = vrot.lane.b32.xlu0 %v167, 111
    %v1093 = vpop.permute.xlu0 %1092
    %1094 = vrot.lane.b32.xlu0 %v170, 111
    %v1095 = vpop.permute.xlu0 %1094
    %1096 = vrot.lane.b32.xlu0 %v173, 111
    %v1097 = vpop.permute.xlu0 %1096
    %1098 = vrot.lane.b32.xlu0 %v176, 111
    %v1099 = vpop.permute.xlu0 %1098
    %1100 = vrot.lane.b32.xlu0 %v196, 111
    %v1101 = vpop.permute.xlu0 %1100
    %1102 = vrot.lane.b32.xlu0 %v199, 111
    %v1103 = vpop.permute.xlu0 %1102
    %1104 = vrot.lane.b32.xlu0 %v202, 111
    %v1105 = vpop.permute.xlu0 %1104
    %1106 = vrot.lane.b32.xlu0 %v205, 111
    %v1107 = vpop.permute.xlu0 %1106
    %vm1108 = vcmp.lt.s32.totalorder %v288, 111
    %v1109 = vsel %vm1108, %v1093, %v1101
    %v1110 = vsel %vm1108, %v1095, %v1103
    %v1111 = vsel %vm1108, %v1097, %v1105
    %v1112 = vsel %vm1108, %v1099, %v1107
    %v1113 = vsel %vm1108, %v1085, %v1093
    %v1114 = vsel %vm1108, %v1087, %v1095
    %v1115 = vsel %vm1108, %v1089, %v1097
    %v1116 = vsel %vm1108, %v1091, %v1099
    %v1117 = vsel %vm1108, %v1077, %v1085
    %v1118 = vsel %vm1108, %v1079, %v1087
    %v1119 = vsel %vm1108, %v1081, %v1089
    %v1120 = vsel %vm1108, %v1083, %v1091
    %v1121 = vsel %vm1108, %v1101, %v1077
    %v1122 = vsel %vm1108, %v1103, %v1079
    %v1123 = vsel %vm1108, %v1105, %v1081
    %v1124 = vsel %vm1108, %v1107, %v1083
    %v1125 = vperm.slane %v215, 0
    %v1126 = vperm.slane %v216, 0
    %v1127 = vperm.slane %v217, 0
    %v1128 = vperm.slane %v218, 0
    %v1129 = vmul.f32 %v1117, %v1125
    %v1130 = vmul.f32 %v1113, %v1126
    %v1131 = vmul.f32 %v1109, %v1127
    %v1132 = vmul.f32 %v1121, %v1128
    %v1133 = vmul.f32 %v1118, %v1125
    %v1134 = vmul.f32 %v1114, %v1126
    %v1135 = vmul.f32 %v1110, %v1127
    %v1136 = vmul.f32 %v1122, %v1128
    %v1137 = vmul.f32 %v1119, %v1125
    %v1138 = vmul.f32 %v1115, %v1126
    %v1139 = vmul.f32 %v1111, %v1127
    %v1140 = vmul.f32 %v1123, %v1128
    %v1141 = vmul.f32 %v1120, %v1125
    %v1142 = vmul.f32 %v1116, %v1126
    %v1143 = vmul.f32 %v1112, %v1127
    %v1144 = vmul.f32 %v1124, %v1128
    %1145 = vset.pattern.permute.xlu0 8
    %1146 = vperm.xlu0 %1145, %v207
    %v1147 = vpop.permute.xlu0 %1146
    %1149 = vset.pattern.permute.xlu0 8
    %1150 = vperm.xlu0 %1149, %v208
    %v1151 = vpop.permute.xlu0 %1150
    %1153 = vset.pattern.permute.xlu0 8
    %1154 = vperm.xlu0 %1153, %v209
    %v1155 = vpop.permute.xlu0 %1154
    %1157 = vset.pattern.permute.xlu0 8
    %1158 = vperm.xlu0 %1157, %v210
    %v1159 = vpop.permute.xlu0 %1158
    %v1161 = vmul.f32 %v1129, %v1147
    %v1162 = vmul.f32 %v1130, %v1147
    %v1163 = vmul.f32 %v1131, %v1147
    %v1164 = vmul.f32 %v1132, %v1147
    %v1165 = vmul.f32 %v1133, %v1151
    %v1166 = vmul.f32 %v1134, %v1151
    %v1167 = vmul.f32 %v1135, %v1151
    %v1168 = vmul.f32 %v1136, %v1151
    %v1169 = vmul.f32 %v1137, %v1155
    %v1170 = vmul.f32 %v1138, %v1155
    %v1171 = vmul.f32 %v1139, %v1155
    %v1172 = vmul.f32 %v1140, %v1155
    %v1173 = vmul.f32 %v1141, %v1159
    %v1174 = vmul.f32 %v1142, %v1159
    %v1175 = vmul.f32 %v1143, %v1159
    %v1176 = vmul.f32 %v1144, %v1159
    %v1177 = vadd.f32 %v1060, %v1161
    %v1178 = vadd.f32 %v1061, %v1162
    %v1179 = vadd.f32 %v1062, %v1163
    %v1180 = vadd.f32 %v1063, %v1164
    %v1181 = vadd.f32 %v1064, %v1165
    %v1182 = vadd.f32 %v1065, %v1166
    %v1183 = vadd.f32 %v1066, %v1167
    %v1184 = vadd.f32 %v1067, %v1168
    %v1185 = vadd.f32 %v1068, %v1169
    %v1186 = vadd.f32 %v1069, %v1170
    %v1187 = vadd.f32 %v1070, %v1171
    %v1188 = vadd.f32 %v1071, %v1172
    %v1189 = vadd.f32 %v1072, %v1173
    %v1190 = vadd.f32 %v1073, %v1174
    %v1191 = vadd.f32 %v1074, %v1175
    %v1192 = vadd.f32 %v1075, %v1176
    %v1193 = vld [vmem:[%s4] sm:$0xff]
    %v1194 = vld [vmem:[%s4 + $0x8] sm:$0xff]
    %v1195 = vld [vmem:[%s4 + $0x10] sm:$0xff]
    %v1196 = vld [vmem:[%s4 + $0x18] sm:$0xff]
    %1198 = vset.pattern.permute.xlu0 0
    %1199 = vperm.xlu0 %1198, %v1193
    %v1200 = vpop.permute.xlu0 %1199
    %1203 = vset.pattern.permute.xlu0 0
    %1204 = vperm.xlu0 %1203, %v1194
    %v1205 = vpop.permute.xlu0 %1204
    %1208 = vset.pattern.permute.xlu0 0
    %1209 = vperm.xlu0 %1208, %v1195
    %v1210 = vpop.permute.xlu0 %1209
    %1213 = vset.pattern.permute.xlu0 0
    %1214 = vperm.xlu0 %1213, %v1196
    %v1215 = vpop.permute.xlu0 %1214
    %v1217 = vadd.f32 %v1177, %v1200
    %v1218 = vadd.f32 %v1178, %v1200
    %v1219 = vadd.f32 %v1179, %v1200
    %v1220 = vadd.f32 %v1180, %v1200
    %v1221 = vadd.f32 %v1181, %v1205
    %v1222 = vadd.f32 %v1182, %v1205
    %v1223 = vadd.f32 %v1183, %v1205
    %v1224 = vadd.f32 %v1184, %v1205
    %v1225 = vadd.f32 %v1185, %v1210
    %v1226 = vadd.f32 %v1186, %v1210
    %v1227 = vadd.f32 %v1187, %v1210
    %v1228 = vadd.f32 %v1188, %v1210
    %v1229 = vadd.f32 %v1189, %v1215
    %v1230 = vadd.f32 %v1190, %v1215
    %v1231 = vadd.f32 %v1191, %v1215
    %v1232 = vadd.f32 %v1192, %v1215
    %v1233 = vmax.f32 %v1217, 0.0
    %v1234 = vmax.f32 %v1218, 0.0
    %v1235 = vmax.f32 %v1219, 0.0
    %v1236 = vmax.f32 %v1220, 0.0
    %v1237 = vmax.f32 %v1221, 0.0
    %v1238 = vmax.f32 %v1222, 0.0
    %v1239 = vmax.f32 %v1223, 0.0
    %v1240 = vmax.f32 %v1224, 0.0
    %v1241 = vmax.f32 %v1225, 0.0
    %v1242 = vmax.f32 %v1226, 0.0
    %v1243 = vmax.f32 %v1227, 0.0
    %v1244 = vmax.f32 %v1228, 0.0
    %v1245 = vmax.f32 %v1229, 0.0
    %v1246 = vmax.f32 %v1230, 0.0
    %v1247 = vmax.f32 %v1231, 0.0
    %v1248 = vmax.f32 %v1232, 0.0
    %v1249 = vld [vmem:[%s5] sm:$0xf]
    %v1250 = vld [vmem:[%s6] sm:$0xf]
    %1252 = vset.pattern.permute.xlu0 0
    %1253 = vperm.xlu0 %1252, %v1250
    %v1254 = vpop.permute.xlu0 %1253
    %vm1256 = vcmask 261120
    %v1258 = vsel %vm1256, %v1249, 0
    %1260 = vmatpush.msra.mxu0 0.0
    %1261 = vmatpush.msra.mxu0 0.0
    %1262 = vmatpush.msra.mxu0 0.0
    %1263 = vmatpush.msra.mxu0 0.0
    %1264 = vmatpush.msra.mxu0 0.0
    %1265 = vmatpush.msra.mxu0 0.0
    %1266 = vmatpush.msra.mxu0 0.0
    %1267 = vmatpush.msra.mxu0 0.0
    %1268 = vmatpush.msra.mxu0 0.0
    %1269 = vmatpush.msra.mxu0 0.0
    %1270 = vmatpush.msra.mxu0 0.0
    %1271 = vmatpush.msra.mxu0 0.0
    %1272 = vmatpush.msra.mxu0 %v1245
    %1273 = vmatpush.msra.mxu0 %v1241
    %1274 = vmatpush.msra.mxu0 %v1237
    %1275 = vmatpush.msra.mxu0 %v1233
    %1276 = vmatmul.f32.gmra.mxu0 %v1258
    %v1277 = vpop.f32.mrf.mxu0
    %v1278 = vadd.f32 %v1254, %v1277
    %1279 = vdwg.mxu0
    %1280 = vmatpush.msra.mxu0 0.0
    %1281 = vmatpush.msra.mxu0 0.0
    %1282 = vmatpush.msra.mxu0 0.0
    %1283 = vmatpush.msra.mxu0 0.0
    %1284 = vmatpush.msra.mxu0 0.0
    %1285 = vmatpush.msra.mxu0 0.0
    %1286 = vmatpush.msra.mxu0 0.0
    %1287 = vmatpush.msra.mxu0 0.0
    %1288 = vmatpush.msra.mxu0 0.0
    %1289 = vmatpush.msra.mxu0 0.0
    %1290 = vmatpush.msra.mxu0 0.0
    %1291 = vmatpush.msra.mxu0 0.0
    %1292 = vmatpush.msra.mxu0 %v1246
    %1293 = vmatpush.msra.mxu0 %v1242
    %1294 = vmatpush.msra.mxu0 %v1238
    %1295 = vmatpush.msra.mxu0 %v1234
    %1296 = vmatmul.f32.gmra.mxu0 %v1258
    %v1297 = vpop.f32.mrf.mxu0
    %v1298 = vadd.f32 %v1254, %v1297
    %1299 = vdwg.mxu0
    %1300 = vmatpush.msra.mxu0 0.0
    %1301 = vmatpush.msra.mxu0 0.0
    %1302 = vmatpush.msra.mxu0 0.0
    %1303 = vmatpush.msra.mxu0 0.0
    %1304 = vmatpush.msra.mxu0 0.0
    %1305 = vmatpush.msra.mxu0 0.0
    %1306 = vmatpush.msra.mxu0 0.0
    %1307 = vmatpush.msra.mxu0 0.0
    %1308 = vmatpush.msra.mxu0 0.0
    %1309 = vmatpush.msra.mxu0 0.0
    %1310 = vmatpush.msra.mxu0 0.0
    %1311 = vmatpush.msra.mxu0 0.0
    %1312 = vmatpush.msra.mxu0 %v1247
    %1313 = vmatpush.msra.mxu0 %v1243
    %1314 = vmatpush.msra.mxu0 %v1239
    %1315 = vmatpush.msra.mxu0 %v1235
    %1316 = vmatmul.f32.gmra.mxu0 %v1258
    %v1317 = vpop.f32.mrf.mxu0
    %v1318 = vadd.f32 %v1254, %v1317
    %1319 = vdwg.mxu0
    %1320 = vmatpush.msra.mxu0 0.0
    %1321 = vmatpush.msra.mxu0 0.0
    %1322 = vmatpush.msra.mxu0 0.0
    %1323 = vmatpush.msra.mxu0 0.0
    %1324 = vmatpush.msra.mxu0 0.0
    %1325 = vmatpush.msra.mxu0 0.0
    %1326 = vmatpush.msra.mxu0 0.0
    %1327 = vmatpush.msra.mxu0 0.0
    %1328 = vmatpush.msra.mxu0 0.0
    %1329 = vmatpush.msra.mxu0 0.0
    %1330 = vmatpush.msra.mxu0 0.0
    %1331 = vmatpush.msra.mxu0 0.0
    %1332 = vmatpush.msra.mxu0 %v1248
    %1333 = vmatpush.msra.mxu0 %v1244
    %1334 = vmatpush.msra.mxu0 %v1240
    %1335 = vmatpush.msra.mxu0 %v1236
    %1336 = vmatmul.f32.gmra.mxu0 %v1258
    %v1337 = vpop.f32.mrf.mxu0
    %v1338 = vadd.f32 %v1254, %v1337
    %1339 = vdwg.mxu0
    %v1342 = vrot.slane %v1298, 4
    %v1343 = vsel %vm82, %v1278, %v1342
    %1345 = vst [vmem:[#allocation2] sm:$0xff] %v1343
    %v1348 = vrot.slane %v1338, 4
    %v1349 = vsel %vm82, %v1318, %v1348
    %s1351 = scalar_lea.vmem [#allocation2], 8
    %1352 = vst [vmem:[%s1351] sm:$0xff] %v1349
    // Predicated region
    $region34: #{tpu_custom_call.1} parent=1 // pred_check
      _
    $region35: #{tpu_custom_call.1} parent=1 // pred_check_branch
      %1354 = sbr.rel (0) target = $region37
    $region36: #{tpu_custom_call.1} parent=1 // pred_region
      %1356 = vsyncadd [#allocation3], 0
      %s1357 = sshll.u32 [#allocation2], 4
      %s1358 = int_to_ptr.vmem [resolvable:$true] %s1357
      %s1359 = sshll.u32 %s8, 4
      %s1360 = int_to_ptr.hbm [resolvable:$true] %s1359
      %1365 = dma.vmem_to_hbm [thread:$0]  %s1358, 256, %s1360, [#allocation3], 128, 128, 8
    $region37: #{tpu_custom_call.1} parent=1 // pred_fallthru
      _
    // Predicated region
    $region38: #{tpu_custom_call.1} parent=1 // pred_check
      _
    $region39: #{tpu_custom_call.1} parent=1 // pred_check_branch
      %1367 = sbr.rel (0) target = $region41
    $region40: #{tpu_custom_call.1} parent=1 // pred_region
      %1369 = dma.done [#allocation3], 256
    $region41: #{tpu_custom_call.1} parent=1 // pred_fallthru
      _
    %1370 = vsyncpa [#allocation3], 1

</llo_original>
